<compile_context>
chip_gen: v6e
topology: v6e:2x2x1
jax: 0.10.0
libtpu: 0.0.40
codegen_flags: <defaults>
</compile_context>

<pallas_src>
import jax
import jax.numpy as jnp
from jax.experimental import pallas as pl
from jax.experimental.pallas import tpu as pltpu

SUBLANE_BF16 = 16   # bf16 packs 16 rows per sublane-vreg


def _round_up(x: int, m: int) -> int:
    return (x + m - 1) // m * m


def _cdiv(a: int, b: int) -> int:
    return -(-a // b)


# ------------------------------------------------------------------ kernel ---
def mlp_kernel(x_ref, w1_ref, b1_ref, w2_ref, b2_ref, w3_ref, b3_ref, o_ref):
    x = x_ref[...]                                        # (TILE_B, in_dim) bf16

    # Layer 1: Linear + ReLU (bf16 MXU matmul, f32 accumulate)
    h1 = jnp.dot(x, w1_ref[...], preferred_element_type=jnp.float32) + b1_ref[...]
    h1 = jnp.maximum(h1, 0.0).astype(w2_ref.dtype)

    # Layer 2: Linear + ReLU
    h2 = jnp.dot(h1, w2_ref[...], preferred_element_type=jnp.float32) + b2_ref[...]
    h2 = jnp.maximum(h2, 0.0).astype(w3_ref.dtype)

    # Output layer: Linear (no activation), compact (tile_b, out_dim) store
    out = jnp.dot(h2, w3_ref[...], preferred_element_type=jnp.float32) + b3_ref[...]
    o_ref[...] = out.astype(o_ref.dtype)


# ----------------------------------------------------------------- wrapper ---
def mlp_forward(x, params, *, tile_b_max=512, out_dtype=jnp.float32):
    """x: (B, input_dim) f32/bf16. params: output of prepare_params()."""
    w1, b1 = params["w1"], params["b1"]
    w2, b2 = params["w2"], params["b2"]
    w3, b3 = params["w3"], params["b3"]

    B, in_dim = x.shape
    d_h1 = w1.shape[1]
    d_h2 = w2.shape[1]
    out_dim = w3.shape[1]
    wdt = w1.dtype
    w_bpe = jnp.dtype(wdt).itemsize
    o_bpe = jnp.dtype(out_dtype).itemsize

    # ---- batch tile selection (multiple of 16; even step count for v7x) -----
    tile_b_max = max(SUBLANE_BF16, _round_up(int(tile_b_max), SUBLANE_BF16))
    tile_b = min(tile_b_max, _round_up(max(B, SUBLANE_BF16), SUBLANE_BF16))
    steps = _cdiv(B, tile_b)
    if steps > 1 and steps % 2 == 1:
        # Even number of grid steps -> balanced split across 2 TensorCores (v7x).
        steps += 1
        tile_b = _round_up(_cdiv(B, steps), SUBLANE_BF16)
    B_pad = steps * tile_b

    # ---- input: single cast; pad rows only when the grid actually needs it --
    x_c = x.astype(wdt)
    if B_pad != B:
        x_p = jnp.zeros((B_pad, in_dim), wdt).at[:B, :].set(x_c)
    else:
        x_p = x_c

    const_map = lambda i: (0, 0)   # weights/biases: same block every step (VMEM-resident)
    row_map = lambda i: (i, 0)     # x / out: march along the batch axis

    # ---- explicit VMEM budget ------------------------------------------------
    weight_bytes = ((in_dim * d_h1 + d_h1 * d_h2 + d_h2 * out_dim) * w_bpe
                    + (d_h1 + d_h2 + out_dim) * 4)
    io_bytes = 2 * tile_b * in_dim * w_bpe + 2 * tile_b * out_dim * o_bpe
    interm_bytes = tile_b * (d_h1 + d_h2) * (4 + w_bpe) + tile_b * out_dim * 4
    vmem_limit = int(1.5 * (2 * weight_bytes + io_bytes + interm_bytes)) + (4 << 20)
    vmem_limit = max(16 << 20, min(vmem_limit, 64 << 20))   # stay inside v7x physical

    flops = 2 * B_pad * (in_dim * d_h1 + d_h1 * d_h2 + d_h2 * out_dim)
    bytes_accessed = x_p.size * w_bpe + weight_bytes + B_pad * out_dim * o_bpe

    def _call(single_buffer_weights: bool):
        if single_buffer_weights:
            wspec = lambda s: pl.BlockSpec(s, const_map, pipeline_mode=pl.Buffered(1))
        else:
            wspec = lambda s: pl.BlockSpec(s, const_map)
        return pl.pallas_call(
            mlp_kernel,
            out_shape=jax.ShapeDtypeStruct((B_pad, out_dim), out_dtype),
            grid_spec=pltpu.PrefetchScalarGridSpec(
                num_scalar_prefetch=0,
                grid=(steps,),
                in_specs=[
                    pl.BlockSpec((tile_b, in_dim), row_map),   # x tile (pipelined)
                    wspec(w1.shape), wspec(b1.shape),          # resident weights/biases
                    wspec(w2.shape), wspec(b2.shape),
                    wspec(w3.shape), wspec(b3.shape),
                ],
                out_specs=pl.BlockSpec((tile_b, out_dim), row_map),
            ),
            compiler_params=pltpu.CompilerParams(
                dimension_semantics=("parallel",),             # megacore-shardable batch axis
                vmem_limit_bytes=vmem_limit,
            ),
            cost_estimate=pl.CostEstimate(
                flops=flops, transcendentals=0, bytes_accessed=bytes_accessed),
        )(x_p, w1, b1, w2, b2, w3, b3)

    try:
        out = _call(True)
    except Exception:
        # Older jax without BlockSpec pipeline_mode support: fall back to the
        # default double-buffered weight blocks (correctness identical).
        out = _call(False)

    return out if B_pad == B else out[:B]


# ------------------------------------------------------------------ params ---
def init_params(key, input_dim, output_dim, dims=(512, 256)):
    """f32 logical params mimicking nn.Linear's U(-1/sqrt(fan_in), 1/sqrt(fan_in)).
    Stored as (in_features, out_features) so the kernel computes x @ W."""
    params = {}
    prev = input_dim
    for i, d in enumerate(list(dims) + [output_dim], start=1):
        key, kw, kb = jax.random.split(key, 3)
        bound = 1.0 / (prev ** 0.5)
        params[f"w{i}"] = jax.random.uniform(
            kw, (prev, d), jnp.float32, minval=-bound, maxval=bound)
        params[f"b{i}"] = jax.random.uniform(
            kb, (1, d), jnp.float32, minval=-bound, maxval=bound)
        prev = d
    return params


def prepare_params(raw, weight_dtype=jnp.bfloat16):
    """Kernel-ready params: bf16 weights (halves HBM streaming bytes), f32 biases.
    (On v7x, weight_dtype could be an fp8 type for very large in_dim.)"""
    return dict(
        w1=raw["w1"].astype(weight_dtype), b1=raw["b1"].astype(jnp.float32),
        w2=raw["w2"].astype(weight_dtype), b2=raw["b2"].astype(jnp.float32),
        w3=raw["w3"].astype(weight_dtype), b3=raw["b3"].astype(jnp.float32),
    )


# --------------------------------------------------------------- reference ---
def mlp_reference(x, raw, weight_dtype=jnp.bfloat16):
    """Pure-JAX reference replicating the kernel's bf16-input / f32-accumulate math."""
    f32 = jnp.float32
    q = lambda a: a.astype(weight_dtype).astype(f32)
    h1 = jnp.maximum(q(x) @ q(raw["w1"]) + raw["b1"], 0.0)
    h2 = jnp.maximum(q(h1) @ q(raw["w2"]) + raw["b2"], 0.0)
    return q(h2) @ q(raw["w3"]) + raw["b3"]


# ------------------------------------------------------------------- main ----
if __name__ == "__main__":
    key = jax.random.PRNGKey(0)
    batch, input_dim, output_dim = 40, 64, 32   # small, non-aligned batch on purpose

    key, kx, kp = jax.random.split(key, 3)
    x = jax.random.normal(kx, (batch, input_dim), jnp.float32)
    raw = init_params(kp, input_dim, output_dim, dims=(512, 256))
    params = prepare_params(raw, weight_dtype=jnp.bfloat16)

    ref = mlp_reference(x, raw, weight_dtype=jnp.bfloat16)

    # Production path: default tile_b_max=512 -> single grid step at this tiny batch.
    out = jax.block_until_ready(mlp_forward(x, params))
    assert out.shape == (batch, output_dim), out.shape
    assert jnp.allclose(out, ref, atol=1e-2, rtol=1e-2), "mismatch vs reference (big tile)"

    # Small-tile path: exercises multi-step grid, even-step balancing (3 -> 4 steps)
    # and batch-row padding.
    out_small = jax.block_until_ready(mlp_forward(x, params, tile_b_max=16))
    assert out_small.shape == (batch, output_dim), out_small.shape
    assert jnp.allclose(out_small, ref, atol=1e-2, rtol=1e-2), "mismatch vs reference (small tile)"

    print("KERNEL_OK")
</pallas_src>

<mosaic_0001>
module attributes {stable_mosaic.version = 11 : i64} {
  func.func @mlp_kernel(%arg0: i32, %arg1: memref<48x64xbf16, #tpu.memory_space<vmem>>, %arg2: memref<64x512xbf16, #tpu.memory_space<vmem>>, %arg3: memref<1x512xf32, #tpu.memory_space<vmem>>, %arg4: memref<512x256xbf16, #tpu.memory_space<vmem>>, %arg5: memref<1x256xf32, #tpu.memory_space<vmem>>, %arg6: memref<256x32xbf16, #tpu.memory_space<vmem>>, %arg7: memref<1x32xf32, #tpu.memory_space<vmem>>, %arg8: memref<48x32xf32, #tpu.memory_space<vmem>>) attributes {dimension_semantics = [#tpu.dimension_semantics<parallel>], iteration_bounds = array<i64: 1>, scalar_prefetch = 0 : i64, scratch_operands = 0 : i64, tpu.core_type = #tpu.core_type<tc>, window_params = [{transform_indices = @transform_0, window_bounds = array<i64: 48, 64>}, {pipeline_mode = #tpu.pipeline_mode<synchronous>, transform_indices = @transform_1, window_bounds = array<i64: 64, 512>}, {pipeline_mode = #tpu.pipeline_mode<synchronous>, transform_indices = @transform_2, window_bounds = array<i64: 1, 512>}, {pipeline_mode = #tpu.pipeline_mode<synchronous>, transform_indices = @transform_3, window_bounds = array<i64: 512, 256>}, {pipeline_mode = #tpu.pipeline_mode<synchronous>, transform_indices = @transform_4, window_bounds = array<i64: 1, 256>}, {pipeline_mode = #tpu.pipeline_mode<synchronous>, transform_indices = @transform_5, window_bounds = array<i64: 256, 32>}, {pipeline_mode = #tpu.pipeline_mode<synchronous>, transform_indices = @transform_6, window_bounds = array<i64: 1, 32>}, {transform_indices = @transform_7, window_bounds = array<i64: 48, 32>}]} {
    %c0 = arith.constant 0 : index
    %c0_0 = arith.constant 0 : index
    %0 = vector.load %arg1[%c0, %c0_0] : memref<48x64xbf16, #tpu.memory_space<vmem>>, vector<48x64xbf16>
    %c0_1 = arith.constant 0 : index
    %c0_2 = arith.constant 0 : index
    %1 = vector.load %arg2[%c0_1, %c0_2] : memref<64x512xbf16, #tpu.memory_space<vmem>>, vector<64x512xbf16>
    %cst = arith.constant dense<0.000000e+00> : vector<48x512xf32>
    %2 = tpu.matmul %0, %1, %cst {dimension_numbers = #tpu.dot_dimension_numbers<[1], [0], [0], [1], [0, 0, 1, 1], [], []>} : vector<48x64xbf16>, vector<64x512xbf16>, vector<48x512xf32> -> vector<48x512xf32>
    %c0_3 = arith.constant 0 : index
    %c0_4 = arith.constant 0 : index
    %3 = vector.load %arg3[%c0_3, %c0_4] : memref<1x512xf32, #tpu.memory_space<vmem>>, vector<1x512xf32>
    %4 = vector.broadcast %3 : vector<1x512xf32> to vector<48x512xf32>
    %5 = arith.addf %2, %4 : vector<48x512xf32>
    %cst_5 = arith.constant 0.000000e+00 : f32
    %6 = vector.broadcast %cst_5 : f32 to vector<48x512xf32>
    %7 = arith.maximumf %5, %6 : vector<48x512xf32>
    %8 = arith.truncf %7 : vector<48x512xf32> to vector<48x512xbf16>
    %c0_6 = arith.constant 0 : index
    %c0_7 = arith.constant 0 : index
    %9 = vector.load %arg4[%c0_6, %c0_7] : memref<512x256xbf16, #tpu.memory_space<vmem>>, vector<512x256xbf16>
    %cst_8 = arith.constant dense<0.000000e+00> : vector<48x256xf32>
    %10 = tpu.matmul %8, %9, %cst_8 {dimension_numbers = #tpu.dot_dimension_numbers<[1], [0], [0], [1], [0, 0, 1, 1], [], []>} : vector<48x512xbf16>, vector<512x256xbf16>, vector<48x256xf32> -> vector<48x256xf32>
    %c0_9 = arith.constant 0 : index
    %c0_10 = arith.constant 0 : index
    %11 = vector.load %arg5[%c0_9, %c0_10] : memref<1x256xf32, #tpu.memory_space<vmem>>, vector<1x256xf32>
    %12 = vector.broadcast %11 : vector<1x256xf32> to vector<48x256xf32>
    %13 = arith.addf %10, %12 : vector<48x256xf32>
    %cst_11 = arith.constant 0.000000e+00 : f32
    %14 = vector.broadcast %cst_11 : f32 to vector<48x256xf32>
    %15 = arith.maximumf %13, %14 : vector<48x256xf32>
    %16 = arith.truncf %15 : vector<48x256xf32> to vector<48x256xbf16>
    %c0_12 = arith.constant 0 : index
    %c0_13 = arith.constant 0 : index
    %17 = vector.load %arg6[%c0_12, %c0_13] : memref<256x32xbf16, #tpu.memory_space<vmem>>, vector<256x32xbf16>
    %cst_14 = arith.constant dense<0.000000e+00> : vector<48x32xf32>
    %18 = tpu.matmul %16, %17, %cst_14 {dimension_numbers = #tpu.dot_dimension_numbers<[1], [0], [0], [1], [0, 0, 1, 1], [], []>} : vector<48x256xbf16>, vector<256x32xbf16>, vector<48x32xf32> -> vector<48x32xf32>
    %c0_15 = arith.constant 0 : index
    %c0_16 = arith.constant 0 : index
    %19 = vector.load %arg7[%c0_15, %c0_16] : memref<1x32xf32, #tpu.memory_space<vmem>>, vector<1x32xf32>
    %20 = vector.broadcast %19 : vector<1x32xf32> to vector<48x32xf32>
    %21 = arith.addf %18, %20 : vector<48x32xf32>
    %c0_17 = arith.constant 0 : index
    %c0_18 = arith.constant 0 : index
    %22 = vector.load %arg8[%c0_17, %c0_18] : memref<48x32xf32, #tpu.memory_space<vmem>>, vector<48x32xf32>
    tpu.vector_store %arg8[%c0_17, %c0_18], %21 {strides = array<i32>} : memref<48x32xf32, #tpu.memory_space<vmem>>, vector<48x32xf32>,
    return
  }
  func.func @transform_0(%arg0: i32) -> (i32, i32) {
    %c0_i32 = arith.constant 0 : i32
    %c0_i32_0 = arith.constant 0 : i32
    return %arg0, %c0_i32 : i32, i32
  }
  func.func @transform_1(%arg0: i32) -> (i32, i32) {
    %c0_i32 = arith.constant 0 : i32
    %c0_i32_0 = arith.constant 0 : i32
    %c0_i32_1 = arith.constant 0 : i32
    return %c0_i32, %c0_i32_0 : i32, i32
  }
  func.func @transform_2(%arg0: i32) -> (i32, i32) {
    %c0_i32 = arith.constant 0 : i32
    %c0_i32_0 = arith.constant 0 : i32
    %c0_i32_1 = arith.constant 0 : i32
    return %c0_i32, %c0_i32_0 : i32, i32
  }
  func.func @transform_3(%arg0: i32) -> (i32, i32) {
    %c0_i32 = arith.constant 0 : i32
    %c0_i32_0 = arith.constant 0 : i32
    %c0_i32_1 = arith.constant 0 : i32
    return %c0_i32, %c0_i32_0 : i32, i32
  }
  func.func @transform_4(%arg0: i32) -> (i32, i32) {
    %c0_i32 = arith.constant 0 : i32
    %c0_i32_0 = arith.constant 0 : i32
    %c0_i32_1 = arith.constant 0 : i32
    return %c0_i32, %c0_i32_0 : i32, i32
  }
  func.func @transform_5(%arg0: i32) -> (i32, i32) {
    %c0_i32 = arith.constant 0 : i32
    %c0_i32_0 = arith.constant 0 : i32
    %c0_i32_1 = arith.constant 0 : i32
    return %c0_i32, %c0_i32_0 : i32, i32
  }
  func.func @transform_6(%arg0: i32) -> (i32, i32) {
    %c0_i32 = arith.constant 0 : i32
    %c0_i32_0 = arith.constant 0 : i32
    %c0_i32_1 = arith.constant 0 : i32
    return %c0_i32, %c0_i32_0 : i32, i32
  }
  func.func @transform_7(%arg0: i32) -> (i32, i32) {
    %c0_i32 = arith.constant 0 : i32
    %c0_i32_0 = arith.constant 0 : i32
    return %arg0, %c0_i32 : i32, i32
  }
}

module attributes {stable_mosaic.version = 11 : i64} {
  func.func @mlp_kernel(%arg0: i32, %arg1: memref<48x64xbf16, #tpu.memory_space<vmem>>, %arg2: memref<64x512xbf16, #tpu.memory_space<vmem>>, %arg3: memref<1x512xf32, #tpu.memory_space<vmem>>, %arg4: memref<512x256xbf16, #tpu.memory_space<vmem>>, %arg5: memref<1x256xf32, #tpu.memory_space<vmem>>, %arg6: memref<256x32xbf16, #tpu.memory_space<vmem>>, %arg7: memref<1x32xf32, #tpu.memory_space<vmem>>, %arg8: memref<48x32xf32, #tpu.memory_space<vmem>>) attributes {dimension_semantics = [#tpu.dimension_semantics<parallel>], iteration_bounds = array<i64: 1>, scalar_prefetch = 0 : i64, scratch_operands = 0 : i64, tpu.core_type = #tpu.core_type<tc>, window_params = [{transform_indices = @transform_0, window_bounds = array<i64: 48, 64>}, {pipeline_mode = #tpu.pipeline_mode<synchronous>, transform_indices = @transform_1, window_bounds = array<i64: 64, 512>}, {pipeline_mode = #tpu.pipeline_mode<synchronous>, transform_indices = @transform_2, window_bounds = array<i64: 1, 512>}, {pipeline_mode = #tpu.pipeline_mode<synchronous>, transform_indices = @transform_3, window_bounds = array<i64: 512, 256>}, {pipeline_mode = #tpu.pipeline_mode<synchronous>, transform_indices = @transform_4, window_bounds = array<i64: 1, 256>}, {pipeline_mode = #tpu.pipeline_mode<synchronous>, transform_indices = @transform_5, window_bounds = array<i64: 256, 32>}, {pipeline_mode = #tpu.pipeline_mode<synchronous>, transform_indices = @transform_6, window_bounds = array<i64: 1, 32>}, {transform_indices = @transform_7, window_bounds = array<i64: 48, 32>}]} {
    %c0 = arith.constant 0 : index
    %c0_0 = arith.constant 0 : index
    %0 = vector.load %arg1[%c0, %c0_0] : memref<48x64xbf16, #tpu.memory_space<vmem>>, vector<48x64xbf16>
    %c0_1 = arith.constant 0 : index
    %c0_2 = arith.constant 0 : index
    %1 = vector.load %arg2[%c0_1, %c0_2] : memref<64x512xbf16, #tpu.memory_space<vmem>>, vector<64x512xbf16>
    %cst = arith.constant dense<0.000000e+00> : vector<48x512xf32>
    %2 = tpu.matmul %0, %1, %cst {dimension_numbers = #tpu.dot_dimension_numbers<[1], [0], [0], [1], [0, 0, 1, 1], [], []>} : vector<48x64xbf16>, vector<64x512xbf16>, vector<48x512xf32> -> vector<48x512xf32>
    %c0_3 = arith.constant 0 : index
    %c0_4 = arith.constant 0 : index
    %3 = vector.load %arg3[%c0_3, %c0_4] : memref<1x512xf32, #tpu.memory_space<vmem>>, vector<1x512xf32>
    %4 = vector.broadcast %3 : vector<1x512xf32> to vector<48x512xf32>
    %5 = arith.addf %2, %4 : vector<48x512xf32>
    %cst_5 = arith.constant 0.000000e+00 : f32
    %6 = vector.broadcast %cst_5 : f32 to vector<48x512xf32>
    %7 = arith.maximumf %5, %6 : vector<48x512xf32>
    %8 = arith.truncf %7 : vector<48x512xf32> to vector<48x512xbf16>
    %c0_6 = arith.constant 0 : index
    %c0_7 = arith.constant 0 : index
    %9 = vector.load %arg4[%c0_6, %c0_7] : memref<512x256xbf16, #tpu.memory_space<vmem>>, vector<512x256xbf16>
    %cst_8 = arith.constant dense<0.000000e+00> : vector<48x256xf32>
    %10 = tpu.matmul %8, %9, %cst_8 {dimension_numbers = #tpu.dot_dimension_numbers<[1], [0], [0], [1], [0, 0, 1, 1], [], []>} : vector<48x512xbf16>, vector<512x256xbf16>, vector<48x256xf32> -> vector<48x256xf32>
    %c0_9 = arith.constant 0 : index
    %c0_10 = arith.constant 0 : index
    %11 = vector.load %arg5[%c0_9, %c0_10] : memref<1x256xf32, #tpu.memory_space<vmem>>, vector<1x256xf32>
    %12 = vector.broadcast %11 : vector<1x256xf32> to vector<48x256xf32>
    %13 = arith.addf %10, %12 : vector<48x256xf32>
    %cst_11 = arith.constant 0.000000e+00 : f32
    %14 = vector.broadcast %cst_11 : f32 to vector<48x256xf32>
    %15 = arith.maximumf %13, %14 : vector<48x256xf32>
    %16 = arith.truncf %15 : vector<48x256xf32> to vector<48x256xbf16>
    %c0_12 = arith.constant 0 : index
    %c0_13 = arith.constant 0 : index
    %17 = vector.load %arg6[%c0_12, %c0_13] : memref<256x32xbf16, #tpu.memory_space<vmem>>, vector<256x32xbf16>
    %cst_14 = arith.constant dense<0.000000e+00> : vector<48x32xf32>
    %18 = tpu.matmul %16, %17, %cst_14 {dimension_numbers = #tpu.dot_dimension_numbers<[1], [0], [0], [1], [0, 0, 1, 1], [], []>} : vector<48x256xbf16>, vector<256x32xbf16>, vector<48x32xf32> -> vector<48x32xf32>
    %c0_15 = arith.constant 0 : index
    %c0_16 = arith.constant 0 : index
    %19 = vector.load %arg7[%c0_15, %c0_16] : memref<1x32xf32, #tpu.memory_space<vmem>>, vector<1x32xf32>
    %20 = vector.broadcast %19 : vector<1x32xf32> to vector<48x32xf32>
    %21 = arith.addf %18, %20 : vector<48x32xf32>
    %c0_17 = arith.constant 0 : index
    %c0_18 = arith.constant 0 : index
    %22 = vector.load %arg8[%c0_17, %c0_18] : memref<48x32xf32, #tpu.memory_space<vmem>>, vector<48x32xf32>
    tpu.vector_store %arg8[%c0_17, %c0_18], %21 {strides = array<i32>} : memref<48x32xf32, #tpu.memory_space<vmem>>, vector<48x32xf32>,
    return
  }
  func.func @transform_0(%arg0: i32) -> (i32, i32) {
    %c0_i32 = arith.constant 0 : i32
    %c0_i32_0 = arith.constant 0 : i32
    return %arg0, %c0_i32 : i32, i32
  }
  func.func @transform_1(%arg0: i32) -> (i32, i32) {
    %c0_i32 = arith.constant 0 : i32
    %c0_i32_0 = arith.constant 0 : i32
    %c0_i32_1 = arith.constant 0 : i32
    return %c0_i32, %c0_i32_0 : i32, i32
  }
  func.func @transform_2(%arg0: i32) -> (i32, i32) {
    %c0_i32 = arith.constant 0 : i32
    %c0_i32_0 = arith.constant 0 : i32
    %c0_i32_1 = arith.constant 0 : i32
    return %c0_i32, %c0_i32_0 : i32, i32
  }
  func.func @transform_3(%arg0: i32) -> (i32, i32) {
    %c0_i32 = arith.constant 0 : i32
    %c0_i32_0 = arith.constant 0 : i32
    %c0_i32_1 = arith.constant 0 : i32
    return %c0_i32, %c0_i32_0 : i32, i32
  }
  func.func @transform_4(%arg0: i32) -> (i32, i32) {
    %c0_i32 = arith.constant 0 : i32
    %c0_i32_0 = arith.constant 0 : i32
    %c0_i32_1 = arith.constant 0 : i32
    return %c0_i32, %c0_i32_0 : i32, i32
  }
  func.func @transform_5(%arg0: i32) -> (i32, i32) {
    %c0_i32 = arith.constant 0 : i32
    %c0_i32_0 = arith.constant 0 : i32
    %c0_i32_1 = arith.constant 0 : i32
    return %c0_i32, %c0_i32_0 : i32, i32
  }
  func.func @transform_6(%arg0: i32) -> (i32, i32) {
    %c0_i32 = arith.constant 0 : i32
    %c0_i32_0 = arith.constant 0 : i32
    %c0_i32_1 = arith.constant 0 : i32
    return %c0_i32, %c0_i32_0 : i32, i32
  }
  func.func @transform_7(%arg0: i32) -> (i32, i32) {
    %c0_i32 = arith.constant 0 : i32
    %c0_i32_0 = arith.constant 0 : i32
    return %arg0, %c0_i32 : i32, i32
  }
}

</mosaic_0001>

<llo_original>
// kernel: tpu_custom_call.1
$region0: #{tpu_custom_call.1}
  #allocation0 [shape = 'u32[]', space=smem, size = 0x4, offset = 0x4, fixed_abs, tag = 'smem constant byte address 0x4 - core index']
  #allocation1 [shape = 'u32[144,128]{1,0:T(1,128)}', space=vmem, size = 0x12000, scoped, tag = 'internal scratch']
  %s0 = inlined_call_operand.vmem [shape: bf16[48,64], index: 0, kind: input, shape index: {}]
  %s1 = inlined_call_operand.vmem [shape: bf16[64,512], index: 1, kind: input, shape index: {}]
  %s2 = inlined_call_operand.vmem [shape: f32[1,512], index: 2, kind: input, shape index: {}]
  %s3 = inlined_call_operand.hbm [shape: bf16[512,256], index: 3, kind: input, shape index: {}]
  %s4 = inlined_call_operand.vmem [shape: f32[1,256], index: 4, kind: input, shape index: {}]
  %s5 = inlined_call_operand.vmem [shape: bf16[256,32], index: 5, kind: input, shape index: {}]
  %s6 = inlined_call_operand.vmem [shape: f32[1,32], index: 6, kind: input, shape index: {}]
  %s7 = inlined_call_operand.vmem [shape: f32[48,32], index: 7, kind: output, shape index: {}]
  %s8 = sld [smem:[#allocation0]]
  $region42: #{tpu_custom_call.1} parent=0
    _
  %s10 = ssub.s32 1, %s8
  %s11 = scalar_select 0, %s10, %s8
  $region1: #{tpu_custom_call.1} parent=0
    #allocation2 [shape = 'u8[262144]{0}', space=vmem, size = 0x40000, scoped, tag = 'input window, operand 3, single buffered']
    #allocation3 [shape = 's32[1]{0}', space=sflag, size = 0x4, scoped, tag = 'scoped memory for tpu_custom_call.1']
    %12 = vsyncpa [#allocation3], 0
    // Predicated region
    $region2: #{tpu_custom_call.1} parent=1 // pred_check
      _
    $region3: #{tpu_custom_call.1} parent=1 // pred_check_branch
      %14 = sbr.rel (0) target = $region5
    $region4: #{tpu_custom_call.1} parent=1 // pred_region
      _
    $region5: #{tpu_custom_call.1} parent=1 // pred_fallthru
      _
    // Predicated region
    $region6: #{tpu_custom_call.1} parent=1 // pred_check
      _
    $region7: #{tpu_custom_call.1} parent=1 // pred_check_branch
      %16 = sbr.rel (0) target = $region9
    $region8: #{tpu_custom_call.1} parent=1 // pred_region
      _
    $region9: #{tpu_custom_call.1} parent=1 // pred_fallthru
      _
    // Predicated region
    $region10: #{tpu_custom_call.1} parent=1 // pred_check
      _
    $region11: #{tpu_custom_call.1} parent=1 // pred_check_branch
      %18 = sbr.rel (0) target = $region13
    $region12: #{tpu_custom_call.1} parent=1 // pred_region
      _
    $region13: #{tpu_custom_call.1} parent=1 // pred_fallthru
      _
    // Predicated region
    $region14: #{tpu_custom_call.1} parent=1 // pred_check
      _
    $region15: #{tpu_custom_call.1} parent=1 // pred_check_branch
      %20 = sbr.rel (0) target = $region17
    $region16: #{tpu_custom_call.1} parent=1 // pred_region
      %s22 = ssub.s32 8192, 8192
      %23 = vsyncadd [#allocation3], %s22
      %s24 = sshll.u32 [#allocation2], 4
      %s25 = int_to_ptr.vmem [resolvable:$true] %s24
      %30 = dma.hbm_to_vmem [thread:$0]  %s3, 8192, %s25, [#allocation3], 128, 128, 8
    $region17: #{tpu_custom_call.1} parent=1 // pred_fallthru
      _
    // Predicated region
    $region18: #{tpu_custom_call.1} parent=1 // pred_check
      _
    $region19: #{tpu_custom_call.1} parent=1 // pred_check_branch
      %32 = sbr.rel (0) target = $region21
    $region20: #{tpu_custom_call.1} parent=1 // pred_region
      _
    $region21: #{tpu_custom_call.1} parent=1 // pred_fallthru
      _
    // Predicated region
    $region22: #{tpu_custom_call.1} parent=1 // pred_check
      _
    $region23: #{tpu_custom_call.1} parent=1 // pred_check_branch
      %34 = sbr.rel (0) target = $region25
    $region24: #{tpu_custom_call.1} parent=1 // pred_region
      _
    $region25: #{tpu_custom_call.1} parent=1 // pred_fallthru
      _
    // Predicated region
    $region26: #{tpu_custom_call.1} parent=1 // pred_check
      _
    $region27: #{tpu_custom_call.1} parent=1 // pred_check_branch
      %36 = sbr.rel (0) target = $region29
    $region28: #{tpu_custom_call.1} parent=1 // pred_region
      _
    $region29: #{tpu_custom_call.1} parent=1 // pred_fallthru
      _
    // Predicated region
    $region30: #{tpu_custom_call.1} parent=1 // pred_check
      _
    $region31: #{tpu_custom_call.1} parent=1 // pred_check_branch
      %38 = sbr.rel (0) target = $region33
    $region32: #{tpu_custom_call.1} parent=1 // pred_region
      %39 = dma.done [#allocation3], 8192
    $region33: #{tpu_custom_call.1} parent=1 // pred_fallthru
      _
    %v41 = vld [vmem:[%s0] sm:$0xf]
    %v42 = vld [vmem:[%s0 + $0x4] sm:$0xf]
    %v43 = vld [vmem:[%s0 + $0x8] sm:$0xf]
    %v44 = vld [vmem:[%s0 + $0xc] sm:$0xf]
    %v45 = vld [vmem:[%s0 + $0x10] sm:$0xf]
    %v46 = vld [vmem:[%s0 + $0x14] sm:$0xf]
    %v47 = vld [vmem:[%s1] sm:$0xff]
    %v48 = vld [vmem:[%s1 + $0x8] sm:$0xff]
    %v49 = vld [vmem:[%s1 + $0x10] sm:$0xff]
    %v50 = vld [vmem:[%s1 + $0x18] sm:$0xff]
    %v51 = vld [vmem:[%s1 + $0x20] sm:$0xff]
    %v52 = vld [vmem:[%s1 + $0x28] sm:$0xff]
    %v53 = vld [vmem:[%s1 + $0x30] sm:$0xff]
    %v54 = vld [vmem:[%s1 + $0x38] sm:$0xff]
    %v55 = vld [vmem:[%s1 + $0x40] sm:$0xff]
    %v56 = vld [vmem:[%s1 + $0x48] sm:$0xff]
    %v57 = vld [vmem:[%s1 + $0x50] sm:$0xff]
    %v58 = vld [vmem:[%s1 + $0x58] sm:$0xff]
    %v59 = vld [vmem:[%s1 + $0x60] sm:$0xff]
    %v60 = vld [vmem:[%s1 + $0x68] sm:$0xff]
    %v61 = vld [vmem:[%s1 + $0x70] sm:$0xff]
    %v62 = vld [vmem:[%s1 + $0x78] sm:$0xff]
    %v63 = vld [vmem:[%s2] sm:$0xf]
    %v65 = vlaneseq
    %v66 = vshrl.u32 %v65, 7
    %v67 = vsub.s32 0, %v66
    %v68 = vrot.slane %v63, %v67
    %v69 = vlaneseq
    %v70 = vshrl.u32 %v69, 7
    %v71 = vsub.s32 1, %v70
    %v72 = vrot.slane %v63, %v71
    %v73 = vlaneseq
    %v74 = vshrl.u32 %v73, 7
    %v75 = vsub.s32 2, %v74
    %v76 = vrot.slane %v63, %v75
    %v77 = vlaneseq
    %v78 = vshrl.u32 %v77, 7
    %v79 = vsub.s32 3, %v78
    %v80 = vrot.slane %v63, %v79
    %v91 = vunpack.c.l.b16 %v41
    %v92 = vunpack.c.l.b16 %v42
    %v93 = vunpack.c.l.b16 %v43
    %v94 = vunpack.c.l.b16 %v44
    %v95 = vunpack.c.l.b16 %v45
    %v96 = vunpack.c.l.b16 %v46
    %v97 = vpack.c.b16 %v92, %v91
    %v98 = vpack.c.b16 %v94, %v93
    %v99 = vpack.c.b16 %v96, %v95
    %v116 = vunpack.c.l.b16 %v47
    %v117 = vunpack.c.h.b16 %v47
    %v118 = vunpack.c.l.b16 %v48
    %v119 = vunpack.c.h.b16 %v48
    %v120 = vunpack.c.l.b16 %v49
    %v121 = vunpack.c.h.b16 %v49
    %v122 = vunpack.c.l.b16 %v50
    %v123 = vunpack.c.h.b16 %v50
    %v124 = vunpack.c.l.b16 %v51
    %v125 = vunpack.c.h.b16 %v51
    %v126 = vunpack.c.l.b16 %v52
    %v127 = vunpack.c.h.b16 %v52
    %v128 = vunpack.c.l.b16 %v53
    %v129 = vunpack.c.h.b16 %v53
    %v130 = vunpack.c.l.b16 %v54
    %v131 = vunpack.c.h.b16 %v54
    %v132 = vunpack.c.l.b16 %v55
    %v133 = vunpack.c.h.b16 %v55
    %v134 = vunpack.c.l.b16 %v56
    %v135 = vunpack.c.h.b16 %v56
    %v136 = vunpack.c.l.b16 %v57
    %v137 = vunpack.c.h.b16 %v57
    %v138 = vunpack.c.l.b16 %v58
    %v139 = vunpack.c.h.b16 %v58
    %v140 = vunpack.c.l.b16 %v59
    %v141 = vunpack.c.h.b16 %v59
    %v142 = vunpack.c.l.b16 %v60
    %v143 = vunpack.c.h.b16 %v60
    %v144 = vunpack.c.l.b16 %v61
    %v145 = vunpack.c.h.b16 %v61
    %v146 = vunpack.c.l.b16 %v62
    %v147 = vunpack.c.h.b16 %v62
    %v148 = vpack.c.b16 %v120, %v116
    %v149 = vpack.c.b16 %v121, %v117
    %v150 = vpack.c.b16 %v122, %v118
    %v151 = vpack.c.b16 %v123, %v119
    %v152 = vpack.c.b16 %v128, %v124
    %v153 = vpack.c.b16 %v129, %v125
    %v154 = vpack.c.b16 %v130, %v126
    %v155 = vpack.c.b16 %v131, %v127
    %v156 = vpack.c.b16 %v136, %v132
    %v157 = vpack.c.b16 %v137, %v133
    %v158 = vpack.c.b16 %v138, %v134
    %v159 = vpack.c.b16 %v139, %v135
    %v160 = vpack.c.b16 %v144, %v140
    %v161 = vpack.c.b16 %v145, %v141
    %v162 = vpack.c.b16 %v146, %v142
    %v163 = vpack.c.b16 %v147, %v143
    %vm180 = vcmask 523264
    %v182 = vsel %vm180, %v97, 0
    %v185 = vsel %vm180, %v98, 0
    %v188 = vsel %vm180, %v99, 0
    %190 = vmatprep.subr.bf16.mxu0 0
    %191 = vmatpush1.bf16.msra.mxu0 0
    %192 = vmatprep.subr.bf16.mxu0 0
    %193 = vmatpush1.bf16.msra.mxu0 0
    %194 = vmatprep.subr.bf16.mxu0 0
    %195 = vmatpush1.bf16.msra.mxu0 0
    %196 = vmatprep.subr.bf16.mxu0 0
    %197 = vmatpush1.bf16.msra.mxu0 0
    %198 = vmatprep.subr.bf16.mxu0 %v161
    %199 = vmatpush1.bf16.msra.mxu0 %v160
    %200 = vmatprep.subr.bf16.mxu0 %v157
    %201 = vmatpush1.bf16.msra.mxu0 %v156
    %202 = vmatprep.subr.bf16.mxu0 %v153
    %203 = vmatpush1.bf16.msra.mxu0 %v152
    %204 = vmatprep.subr.bf16.mxu0 %v149
    %205 = vmatpush1.bf16.msra.mxu0 %v148
    %206 = vmatprep.subr.bf16.mxu0 0
    %207 = vmatpush2.bf16.msra.mxu0 0
    %208 = vmatprep.subr.bf16.mxu0 0
    %209 = vmatpush2.bf16.msra.mxu0 0
    %210 = vmatprep.subr.bf16.mxu0 0
    %211 = vmatpush2.bf16.msra.mxu0 0
    %212 = vmatprep.subr.bf16.mxu0 0
    %213 = vmatpush2.bf16.msra.mxu0 0
    %214 = vmatprep.subr.bf16.mxu0 0
    %215 = vmatpush2.bf16.msra.mxu0 0
    %216 = vmatprep.subr.bf16.mxu0 0
    %217 = vmatpush2.bf16.msra.mxu0 0
    %218 = vmatprep.subr.bf16.mxu0 0
    %219 = vmatpush2.bf16.msra.mxu0 0
    %220 = vmatprep.subr.bf16.mxu0 0
    %221 = vmatpush2.bf16.msra.mxu0 0
    %222 = vmatprep.mubr.bf16.mxu0 0
    %223 = vmatmul.mubr.bf16.gmra.mxu0 %v182
    %v224 = vpop.f32.mrf.mxu0
    %v225 = vadd.f32 %v68, %v224
    %v226 = vpop.f32.mrf.mxu0
    %v227 = vadd.f32 %v72, %v226
    %v228 = vpop.f32.mrf.mxu0
    %v229 = vadd.f32 %v68, %v228
    %v230 = vpop.f32.mrf.mxu0
    %v231 = vadd.f32 %v72, %v230
    %232 = vmatprep.mubr.bf16.mxu0 0
    %233 = vmatmul.mubr.bf16.gmra.mxu0 %v185
    %v234 = vpop.f32.mrf.mxu0
    %v235 = vadd.f32 %v68, %v234
    %v236 = vpop.f32.mrf.mxu0
    %v237 = vadd.f32 %v72, %v236
    %v238 = vpop.f32.mrf.mxu0
    %v239 = vadd.f32 %v68, %v238
    %v240 = vpop.f32.mrf.mxu0
    %v241 = vadd.f32 %v72, %v240
    %242 = vmatprep.mubr.bf16.mxu0 0
    %243 = vmatmul.mubr.bf16.gmra.mxu0 %v188
    %v244 = vpop.f32.mrf.mxu0
    %v245 = vadd.f32 %v68, %v244
    %v246 = vpop.f32.mrf.mxu0
    %v247 = vadd.f32 %v72, %v246
    %v248 = vpop.f32.mrf.mxu0
    %v249 = vadd.f32 %v68, %v248
    %v250 = vpop.f32.mrf.mxu0
    %v251 = vadd.f32 %v72, %v250
    %252 = vdwg.mxu0
    %253 = vmatprep.subr.bf16.mxu0 0
    %254 = vmatpush1.bf16.msra.mxu0 0
    %255 = vmatprep.subr.bf16.mxu0 0
    %256 = vmatpush1.bf16.msra.mxu0 0
    %257 = vmatprep.subr.bf16.mxu0 0
    %258 = vmatpush1.bf16.msra.mxu0 0
    %259 = vmatprep.subr.bf16.mxu0 0
    %260 = vmatpush1.bf16.msra.mxu0 0
    %261 = vmatprep.subr.bf16.mxu0 %v163
    %262 = vmatpush1.bf16.msra.mxu0 %v162
    %263 = vmatprep.subr.bf16.mxu0 %v159
    %264 = vmatpush1.bf16.msra.mxu0 %v158
    %265 = vmatprep.subr.bf16.mxu0 %v155
    %266 = vmatpush1.bf16.msra.mxu0 %v154
    %267 = vmatprep.subr.bf16.mxu0 %v151
    %268 = vmatpush1.bf16.msra.mxu0 %v150
    %269 = vmatprep.subr.bf16.mxu0 0
    %270 = vmatpush2.bf16.msra.mxu0 0
    %271 = vmatprep.subr.bf16.mxu0 0
    %272 = vmatpush2.bf16.msra.mxu0 0
    %273 = vmatprep.subr.bf16.mxu0 0
    %274 = vmatpush2.bf16.msra.mxu0 0
    %275 = vmatprep.subr.bf16.mxu0 0
    %276 = vmatpush2.bf16.msra.mxu0 0
    %277 = vmatprep.subr.bf16.mxu0 0
    %278 = vmatpush2.bf16.msra.mxu0 0
    %279 = vmatprep.subr.bf16.mxu0 0
    %280 = vmatpush2.bf16.msra.mxu0 0
    %281 = vmatprep.subr.bf16.mxu0 0
    %282 = vmatpush2.bf16.msra.mxu0 0
    %283 = vmatprep.subr.bf16.mxu0 0
    %284 = vmatpush2.bf16.msra.mxu0 0
    %285 = vmatprep.mubr.bf16.mxu0 0
    %286 = vmatmul.mubr.bf16.gmra.mxu0 %v182
    %v287 = vpop.f32.mrf.mxu0
    %v288 = vadd.f32 %v76, %v287
    %v289 = vpop.f32.mrf.mxu0
    %v290 = vadd.f32 %v80, %v289
    %v291 = vpop.f32.mrf.mxu0
    %v292 = vadd.f32 %v76, %v291
    %v293 = vpop.f32.mrf.mxu0
    %v294 = vadd.f32 %v80, %v293
    %295 = vmatprep.mubr.bf16.mxu0 0
    %296 = vmatmul.mubr.bf16.gmra.mxu0 %v185
    %v297 = vpop.f32.mrf.mxu0
    %v298 = vadd.f32 %v76, %v297
    %v299 = vpop.f32.mrf.mxu0
    %v300 = vadd.f32 %v80, %v299
    %v301 = vpop.f32.mrf.mxu0
    %v302 = vadd.f32 %v76, %v301
    %v303 = vpop.f32.mrf.mxu0
    %v304 = vadd.f32 %v80, %v303
    %305 = vmatprep.mubr.bf16.mxu0 0
    %306 = vmatmul.mubr.bf16.gmra.mxu0 %v188
    %v307 = vpop.f32.mrf.mxu0
    %v308 = vadd.f32 %v76, %v307
    %v309 = vpop.f32.mrf.mxu0
    %v310 = vadd.f32 %v80, %v309
    %v311 = vpop.f32.mrf.mxu0
    %v312 = vadd.f32 %v76, %v311
    %v313 = vpop.f32.mrf.mxu0
    %v314 = vadd.f32 %v80, %v313
    %315 = vdwg.mxu0
    %v316 = vmax.f32 %v225, 0.0
    %v317 = vmax.f32 %v227, 0.0
    %v318 = vmax.f32 %v288, 0.0
    %v319 = vmax.f32 %v290, 0.0
    %v320 = vmax.f32 %v229, 0.0
    %v321 = vmax.f32 %v231, 0.0
    %v322 = vmax.f32 %v292, 0.0
    %v323 = vmax.f32 %v294, 0.0
    %v324 = vmax.f32 %v235, 0.0
    %v325 = vmax.f32 %v237, 0.0
    %v326 = vmax.f32 %v298, 0.0
    %v327 = vmax.f32 %v300, 0.0
    %v328 = vmax.f32 %v239, 0.0
    %v329 = vmax.f32 %v241, 0.0
    %v330 = vmax.f32 %v302, 0.0
    %v331 = vmax.f32 %v304, 0.0
    %v332 = vmax.f32 %v245, 0.0
    %v333 = vmax.f32 %v247, 0.0
    %v334 = vmax.f32 %v308, 0.0
    %v335 = vmax.f32 %v310, 0.0
    %v336 = vmax.f32 %v249, 0.0
    %v337 = vmax.f32 %v251, 0.0
    %v338 = vmax.f32 %v312, 0.0
    %v339 = vmax.f32 %v314, 0.0
    %v340 = vpack.c.bf16 %v320, %v316
    %v341 = vpack.c.bf16 %v321, %v317
    %v342 = vpack.c.bf16 %v322, %v318
    %v343 = vpack.c.bf16 %v323, %v319
    %v344 = vpack.c.bf16 %v328, %v324
    %v345 = vpack.c.bf16 %v329, %v325
    %v346 = vpack.c.bf16 %v330, %v326
    %v347 = vpack.c.bf16 %v331, %v327
    %v348 = vpack.c.bf16 %v336, %v332
    %v349 = vpack.c.bf16 %v337, %v333
    %v350 = vpack.c.bf16 %v338, %v334
    %v351 = vpack.c.bf16 %v339, %v335
    %v352 = vld [vmem:[#allocation2] sm:$0xff]
    %v353 = vld [vmem:[#allocation2 + $0x8] sm:$0xff]
    %v354 = vld [vmem:[#allocation2 + $0x10] sm:$0xff]
    %v355 = vld [vmem:[#allocation2 + $0x18] sm:$0xff]
    %v356 = vld [vmem:[#allocation2 + $0x20] sm:$0xff]
    %v357 = vld [vmem:[#allocation2 + $0x28] sm:$0xff]
    %v358 = vld [vmem:[#allocation2 + $0x30] sm:$0xff]
    %v359 = vld [vmem:[#allocation2 + $0x38] sm:$0xff]
    %v360 = vld [vmem:[#allocation2 + $0x40] sm:$0xff]
    %v361 = vld [vmem:[#allocation2 + $0x48] sm:$0xff]
    %v362 = vld [vmem:[#allocation2 + $0x50] sm:$0xff]
    %v363 = vld [vmem:[#allocation2 + $0x58] sm:$0xff]
    %v364 = vld [vmem:[#allocation2 + $0x60] sm:$0xff]
    %v365 = vld [vmem:[#allocation2 + $0x68] sm:$0xff]
    %v366 = vld [vmem:[#allocation2 + $0x70] sm:$0xff]
    %v367 = vld [vmem:[#allocation2 + $0x78] sm:$0xff]
    %v368 = vld [vmem:[#allocation2 + $0x80] sm:$0xff]
    %v369 = vld [vmem:[#allocation2 + $0x88] sm:$0xff]
    %v370 = vld [vmem:[#allocation2 + $0x90] sm:$0xff]
    %v371 = vld [vmem:[#allocation2 + $0x98] sm:$0xff]
    %v372 = vld [vmem:[#allocation2 + $0xa0] sm:$0xff]
    %v373 = vld [vmem:[#allocation2 + $0xa8] sm:$0xff]
    %v374 = vld [vmem:[#allocation2 + $0xb0] sm:$0xff]
    %v375 = vld [vmem:[#allocation2 + $0xb8] sm:$0xff]
    %v376 = vld [vmem:[#allocation2 + $0xc0] sm:$0xff]
    %v377 = vld [vmem:[#allocation2 + $0xc8] sm:$0xff]
    %v378 = vld [vmem:[#allocation2 + $0xd0] sm:$0xff]
    %v379 = vld [vmem:[#allocation2 + $0xd8] sm:$0xff]
    %v380 = vld [vmem:[#allocation2 + $0xe0] sm:$0xff]
    %v381 = vld [vmem:[#allocation2 + $0xe8] sm:$0xff]
    %v382 = vld [vmem:[#allocation2 + $0xf0] sm:$0xff]
    %v383 = vld [vmem:[#allocation2 + $0xf8] sm:$0xff]
    %v384 = vld [vmem:[#allocation2 + $0x100] sm:$0xff]
    %v385 = vld [vmem:[#allocation2 + $0x108] sm:$0xff]
    %v386 = vld [vmem:[#allocation2 + $0x110] sm:$0xff]
    %v387 = vld [vmem:[#allocation2 + $0x118] sm:$0xff]
    %v388 = vld [vmem:[#allocation2 + $0x120] sm:$0xff]
    %v389 = vld [vmem:[#allocation2 + $0x128] sm:$0xff]
    %v390 = vld [vmem:[#allocation2 + $0x130] sm:$0xff]
    %v391 = vld [vmem:[#allocation2 + $0x138] sm:$0xff]
    %v392 = vld [vmem:[#allocation2 + $0x140] sm:$0xff]
    %v393 = vld [vmem:[#allocation2 + $0x148] sm:$0xff]
    %v394 = vld [vmem:[#allocation2 + $0x150] sm:$0xff]
    %v395 = vld [vmem:[#allocation2 + $0x158] sm:$0xff]
    %v396 = vld [vmem:[#allocation2 + $0x160] sm:$0xff]
    %v397 = vld [vmem:[#allocation2 + $0x168] sm:$0xff]
    %v398 = vld [vmem:[#allocation2 + $0x170] sm:$0xff]
    %v399 = vld [vmem:[#allocation2 + $0x178] sm:$0xff]
    %v400 = vld [vmem:[#allocation2 + $0x180] sm:$0xff]
    %v401 = vld [vmem:[#allocation2 + $0x188] sm:$0xff]
    %v402 = vld [vmem:[#allocation2 + $0x190] sm:$0xff]
    %v403 = vld [vmem:[#allocation2 + $0x198] sm:$0xff]
    %v404 = vld [vmem:[#allocation2 + $0x1a0] sm:$0xff]
    %v405 = vld [vmem:[#allocation2 + $0x1a8] sm:$0xff]
    %v406 = vld [vmem:[#allocation2 + $0x1b0] sm:$0xff]
    %v407 = vld [vmem:[#allocation2 + $0x1b8] sm:$0xff]
    %v408 = vld [vmem:[#allocation2 + $0x1c0] sm:$0xff]
    %v409 = vld [vmem:[#allocation2 + $0x1c8] sm:$0xff]
    %v410 = vld [vmem:[#allocation2 + $0x1d0] sm:$0xff]
    %v411 = vld [vmem:[#allocation2 + $0x1d8] sm:$0xff]
    %v412 = vld [vmem:[#allocation2 + $0x1e0] sm:$0xff]
    %v413 = vld [vmem:[#allocation2 + $0x1e8] sm:$0xff]
    %v414 = vld [vmem:[#allocation2 + $0x1f0] sm:$0xff]
    %v415 = vld [vmem:[#allocation2 + $0x1f8] sm:$0xff]
    %v416 = vld [vmem:[%s4] sm:$0x3]
    %v418 = vlaneseq
    %v419 = vshrl.u32 %v418, 7
    %v420 = vsub.s32 0, %v419
    %v421 = vrot.slane %v416, %v420
    %v422 = vlaneseq
    %v423 = vshrl.u32 %v422, 7
    %v424 = vsub.s32 1, %v423
    %v425 = vrot.slane %v416, %v424
    %v492 = vunpack.c.l.b16 %v352
    %v493 = vunpack.c.h.b16 %v352
    %v494 = vunpack.c.l.b16 %v353
    %v495 = vunpack.c.h.b16 %v353
    %v496 = vunpack.c.l.b16 %v354
    %v497 = vunpack.c.h.b16 %v354
    %v498 = vunpack.c.l.b16 %v355
    %v499 = vunpack.c.h.b16 %v355
    %v500 = vunpack.c.l.b16 %v356
    %v501 = vunpack.c.h.b16 %v356
    %v502 = vunpack.c.l.b16 %v357
    %v503 = vunpack.c.h.b16 %v357
    %v504 = vunpack.c.l.b16 %v358
    %v505 = vunpack.c.h.b16 %v358
    %v506 = vunpack.c.l.b16 %v359
    %v507 = vunpack.c.h.b16 %v359
    %v508 = vunpack.c.l.b16 %v360
    %v509 = vunpack.c.h.b16 %v360
    %v510 = vunpack.c.l.b16 %v361
    %v511 = vunpack.c.h.b16 %v361
    %v512 = vunpack.c.l.b16 %v362
    %v513 = vunpack.c.h.b16 %v362
    %v514 = vunpack.c.l.b16 %v363
    %v515 = vunpack.c.h.b16 %v363
    %v516 = vunpack.c.l.b16 %v364
    %v517 = vunpack.c.h.b16 %v364
    %v518 = vunpack.c.l.b16 %v365
    %v519 = vunpack.c.h.b16 %v365
    %v520 = vunpack.c.l.b16 %v366
    %v521 = vunpack.c.h.b16 %v366
    %v522 = vunpack.c.l.b16 %v367
    %v523 = vunpack.c.h.b16 %v367
    %v524 = vunpack.c.l.b16 %v368
    %v525 = vunpack.c.h.b16 %v368
    %v526 = vunpack.c.l.b16 %v369
    %v527 = vunpack.c.h.b16 %v369
    %v528 = vunpack.c.l.b16 %v370
    %v529 = vunpack.c.h.b16 %v370
    %v530 = vunpack.c.l.b16 %v371
    %v531 = vunpack.c.h.b16 %v371
    %v532 = vunpack.c.l.b16 %v372
    %v533 = vunpack.c.h.b16 %v372
    %v534 = vunpack.c.l.b16 %v373
    %v535 = vunpack.c.h.b16 %v373
    %v536 = vunpack.c.l.b16 %v374
    %v537 = vunpack.c.h.b16 %v374
    %v538 = vunpack.c.l.b16 %v375
    %v539 = vunpack.c.h.b16 %v375
    %v540 = vunpack.c.l.b16 %v376
    %v541 = vunpack.c.h.b16 %v376
    %v542 = vunpack.c.l.b16 %v377
    %v543 = vunpack.c.h.b16 %v377
    %v544 = vunpack.c.l.b16 %v378
    %v545 = vunpack.c.h.b16 %v378
    %v546 = vunpack.c.l.b16 %v379
    %v547 = vunpack.c.h.b16 %v379
    %v548 = vunpack.c.l.b16 %v380
    %v549 = vunpack.c.h.b16 %v380
    %v550 = vunpack.c.l.b16 %v381
    %v551 = vunpack.c.h.b16 %v381
    %v552 = vunpack.c.l.b16 %v382
    %v553 = vunpack.c.h.b16 %v382
    %v554 = vunpack.c.l.b16 %v383
    %v555 = vunpack.c.h.b16 %v383
    %v556 = vunpack.c.l.b16 %v384
    %v557 = vunpack.c.h.b16 %v384
    %v558 = vunpack.c.l.b16 %v385
    %v559 = vunpack.c.h.b16 %v385
    %v560 = vunpack.c.l.b16 %v386
    %v561 = vunpack.c.h.b16 %v386
    %v562 = vunpack.c.l.b16 %v387
    %v563 = vunpack.c.h.b16 %v387
    %v564 = vunpack.c.l.b16 %v388
    %v565 = vunpack.c.h.b16 %v388
    %v566 = vunpack.c.l.b16 %v389
    %v567 = vunpack.c.h.b16 %v389
    %v568 = vunpack.c.l.b16 %v390
    %v569 = vunpack.c.h.b16 %v390
    %v570 = vunpack.c.l.b16 %v391
    %v571 = vunpack.c.h.b16 %v391
    %v572 = vunpack.c.l.b16 %v392
    %v573 = vunpack.c.h.b16 %v392
    %v574 = vunpack.c.l.b16 %v393
    %v575 = vunpack.c.h.b16 %v393
    %v576 = vunpack.c.l.b16 %v394
    %v577 = vunpack.c.h.b16 %v394
    %v578 = vunpack.c.l.b16 %v395
    %v579 = vunpack.c.h.b16 %v395
    %v580 = vunpack.c.l.b16 %v396
    %v581 = vunpack.c.h.b16 %v396
    %v582 = vunpack.c.l.b16 %v397
    %v583 = vunpack.c.h.b16 %v397
    %v584 = vunpack.c.l.b16 %v398
    %v585 = vunpack.c.h.b16 %v398
    %v586 = vunpack.c.l.b16 %v399
    %v587 = vunpack.c.h.b16 %v399
    %v588 = vunpack.c.l.b16 %v400
    %v589 = vunpack.c.h.b16 %v400
    %v590 = vunpack.c.l.b16 %v401
    %v591 = vunpack.c.h.b16 %v401
    %v592 = vunpack.c.l.b16 %v402
    %v593 = vunpack.c.h.b16 %v402
    %v594 = vunpack.c.l.b16 %v403
    %v595 = vunpack.c.h.b16 %v403
    %v596 = vunpack.c.l.b16 %v404
    %v597 = vunpack.c.h.b16 %v404
    %v598 = vunpack.c.l.b16 %v405
    %v599 = vunpack.c.h.b16 %v405
    %v600 = vunpack.c.l.b16 %v406
    %v601 = vunpack.c.h.b16 %v406
    %v602 = vunpack.c.l.b16 %v407
    %v603 = vunpack.c.h.b16 %v407
    %v604 = vunpack.c.l.b16 %v408
    %v605 = vunpack.c.h.b16 %v408
    %v606 = vunpack.c.l.b16 %v409
    %v607 = vunpack.c.h.b16 %v409
    %v608 = vunpack.c.l.b16 %v410
    %v609 = vunpack.c.h.b16 %v410
    %v610 = vunpack.c.l.b16 %v411
    %v611 = vunpack.c.h.b16 %v411
    %v612 = vunpack.c.l.b16 %v412
    %v613 = vunpack.c.h.b16 %v412
    %v614 = vunpack.c.l.b16 %v413
    %v615 = vunpack.c.h.b16 %v413
    %v616 = vunpack.c.l.b16 %v414
    %v617 = vunpack.c.h.b16 %v414
    %v618 = vunpack.c.l.b16 %v415
    %v619 = vunpack.c.h.b16 %v415
    %v620 = vpack.c.b16 %v494, %v492
    %v621 = vpack.c.b16 %v495, %v493
    %v622 = vpack.c.b16 %v498, %v496
    %v623 = vpack.c.b16 %v499, %v497
    %v624 = vpack.c.b16 %v502, %v500
    %v625 = vpack.c.b16 %v503, %v501
    %v626 = vpack.c.b16 %v506, %v504
    %v627 = vpack.c.b16 %v507, %v505
    %v628 = vpack.c.b16 %v510, %v508
    %v629 = vpack.c.b16 %v511, %v509
    %v630 = vpack.c.b16 %v514, %v512
    %v631 = vpack.c.b16 %v515, %v513
    %v632 = vpack.c.b16 %v518, %v516
    %v633 = vpack.c.b16 %v519, %v517
    %v634 = vpack.c.b16 %v522, %v520
    %v635 = vpack.c.b16 %v523, %v521
    %v636 = vpack.c.b16 %v526, %v524
    %v637 = vpack.c.b16 %v527, %v525
    %v638 = vpack.c.b16 %v530, %v528
    %v639 = vpack.c.b16 %v531, %v529
    %v640 = vpack.c.b16 %v534, %v532
    %v641 = vpack.c.b16 %v535, %v533
    %v642 = vpack.c.b16 %v538, %v536
    %v643 = vpack.c.b16 %v539, %v537
    %v644 = vpack.c.b16 %v542, %v540
    %v645 = vpack.c.b16 %v543, %v541
    %v646 = vpack.c.b16 %v546, %v544
    %v647 = vpack.c.b16 %v547, %v545
    %v648 = vpack.c.b16 %v550, %v548
    %v649 = vpack.c.b16 %v551, %v549
    %v650 = vpack.c.b16 %v554, %v552
    %v651 = vpack.c.b16 %v555, %v553
    %v652 = vpack.c.b16 %v558, %v556
    %v653 = vpack.c.b16 %v559, %v557
    %v654 = vpack.c.b16 %v562, %v560
    %v655 = vpack.c.b16 %v563, %v561
    %v656 = vpack.c.b16 %v566, %v564
    %v657 = vpack.c.b16 %v567, %v565
    %v658 = vpack.c.b16 %v570, %v568
    %v659 = vpack.c.b16 %v571, %v569
    %v660 = vpack.c.b16 %v574, %v572
    %v661 = vpack.c.b16 %v575, %v573
    %v662 = vpack.c.b16 %v578, %v576
    %v663 = vpack.c.b16 %v579, %v577
    %v664 = vpack.c.b16 %v582, %v580
    %v665 = vpack.c.b16 %v583, %v581
    %v666 = vpack.c.b16 %v586, %v584
    %v667 = vpack.c.b16 %v587, %v585
    %v668 = vpack.c.b16 %v590, %v588
    %v669 = vpack.c.b16 %v591, %v589
    %v670 = vpack.c.b16 %v594, %v592
    %v671 = vpack.c.b16 %v595, %v593
    %v672 = vpack.c.b16 %v598, %v596
    %v673 = vpack.c.b16 %v599, %v597
    %v674 = vpack.c.b16 %v602, %v600
    %v675 = vpack.c.b16 %v603, %v601
    %v676 = vpack.c.b16 %v606, %v604
    %v677 = vpack.c.b16 %v607, %v605
    %v678 = vpack.c.b16 %v610, %v608
    %v679 = vpack.c.b16 %v611, %v609
    %v680 = vpack.c.b16 %v614, %v612
    %v681 = vpack.c.b16 %v615, %v613
    %v682 = vpack.c.b16 %v618, %v616
    %v683 = vpack.c.b16 %v619, %v617
    %748 = vmatprep.subr.bf16.mxu0 %v635
    %749 = vmatpush1.bf16.msra.mxu0 %v634
    %750 = vmatprep.subr.bf16.mxu0 %v633
    %751 = vmatpush1.bf16.msra.mxu0 %v632
    %752 = vmatprep.subr.bf16.mxu0 %v631
    %753 = vmatpush1.bf16.msra.mxu0 %v630
    %754 = vmatprep.subr.bf16.mxu0 %v629
    %755 = vmatpush1.bf16.msra.mxu0 %v628
    %756 = vmatprep.subr.bf16.mxu0 %v627
    %757 = vmatpush1.bf16.msra.mxu0 %v626
    %758 = vmatprep.subr.bf16.mxu0 %v625
    %759 = vmatpush1.bf16.msra.mxu0 %v624
    %760 = vmatprep.subr.bf16.mxu0 %v623
    %761 = vmatpush1.bf16.msra.mxu0 %v622
    %762 = vmatprep.subr.bf16.mxu0 %v621
    %763 = vmatpush1.bf16.msra.mxu0 %v620
    %764 = vmatprep.subr.bf16.mxu0 %v651
    %765 = vmatpush2.bf16.msra.mxu0 %v650
    %766 = vmatprep.subr.bf16.mxu0 %v649
    %767 = vmatpush2.bf16.msra.mxu0 %v648
    %768 = vmatprep.subr.bf16.mxu0 %v647
    %769 = vmatpush2.bf16.msra.mxu0 %v646
    %770 = vmatprep.subr.bf16.mxu0 %v645
    %771 = vmatpush2.bf16.msra.mxu0 %v644
    %772 = vmatprep.subr.bf16.mxu0 %v643
    %773 = vmatpush2.bf16.msra.mxu0 %v642
    %774 = vmatprep.subr.bf16.mxu0 %v641
    %775 = vmatpush2.bf16.msra.mxu0 %v640
    %776 = vmatprep.subr.bf16.mxu0 %v639
    %777 = vmatpush2.bf16.msra.mxu0 %v638
    %778 = vmatprep.subr.bf16.mxu0 %v637
    %779 = vmatpush2.bf16.msra.mxu0 %v636
    %780 = vmatprep.mubr.bf16.mxu0 %v341
    %781 = vmatmul.mubr.bf16.gmra.mxu0 %v340
    %v782 = vpop.f32.mrf.mxu0
    %v783 = vadd.f32 %v421, %v782
    %v784 = vpop.f32.mrf.mxu0
    %v785 = vadd.f32 %v425, %v784
    %v786 = vpop.f32.mrf.mxu0
    %v787 = vadd.f32 %v421, %v786
    %v788 = vpop.f32.mrf.mxu0
    %v789 = vadd.f32 %v425, %v788
    %790 = vmatprep.mubr.bf16.mxu0 %v345
    %791 = vmatmul.mubr.bf16.gmra.mxu0 %v344
    %v792 = vpop.f32.mrf.mxu0
    %v793 = vadd.f32 %v421, %v792
    %v794 = vpop.f32.mrf.mxu0
    %v795 = vadd.f32 %v425, %v794
    %v796 = vpop.f32.mrf.mxu0
    %v797 = vadd.f32 %v421, %v796
    %v798 = vpop.f32.mrf.mxu0
    %v799 = vadd.f32 %v425, %v798
    %800 = vmatprep.mubr.bf16.mxu0 %v349
    %801 = vmatmul.mubr.bf16.gmra.mxu0 %v348
    %v802 = vpop.f32.mrf.mxu0
    %v803 = vadd.f32 %v421, %v802
    %v804 = vpop.f32.mrf.mxu0
    %v805 = vadd.f32 %v425, %v804
    %v806 = vpop.f32.mrf.mxu0
    %v807 = vadd.f32 %v421, %v806
    %v808 = vpop.f32.mrf.mxu0
    %v809 = vadd.f32 %v425, %v808
    %810 = vdwg.mxu0
    %811 = vmatprep.subr.bf16.mxu0 %v667
    %812 = vmatpush1.bf16.msra.mxu0 %v666
    %813 = vmatprep.subr.bf16.mxu0 %v665
    %814 = vmatpush1.bf16.msra.mxu0 %v664
    %815 = vmatprep.subr.bf16.mxu0 %v663
    %816 = vmatpush1.bf16.msra.mxu0 %v662
    %817 = vmatprep.subr.bf16.mxu0 %v661
    %818 = vmatpush1.bf16.msra.mxu0 %v660
    %819 = vmatprep.subr.bf16.mxu0 %v659
    %820 = vmatpush1.bf16.msra.mxu0 %v658
    %821 = vmatprep.subr.bf16.mxu0 %v657
    %822 = vmatpush1.bf16.msra.mxu0 %v656
    %823 = vmatprep.subr.bf16.mxu0 %v655
    %824 = vmatpush1.bf16.msra.mxu0 %v654
    %825 = vmatprep.subr.bf16.mxu0 %v653
    %826 = vmatpush1.bf16.msra.mxu0 %v652
    %827 = vmatprep.subr.bf16.mxu0 %v683
    %828 = vmatpush2.bf16.msra.mxu0 %v682
    %829 = vmatprep.subr.bf16.mxu0 %v681
    %830 = vmatpush2.bf16.msra.mxu0 %v680
    %831 = vmatprep.subr.bf16.mxu0 %v679
    %832 = vmatpush2.bf16.msra.mxu0 %v678
    %833 = vmatprep.subr.bf16.mxu0 %v677
    %834 = vmatpush2.bf16.msra.mxu0 %v676
    %835 = vmatprep.subr.bf16.mxu0 %v675
    %836 = vmatpush2.bf16.msra.mxu0 %v674
    %837 = vmatprep.subr.bf16.mxu0 %v673
    %838 = vmatpush2.bf16.msra.mxu0 %v672
    %839 = vmatprep.subr.bf16.mxu0 %v671
    %840 = vmatpush2.bf16.msra.mxu0 %v670
    %841 = vmatprep.subr.bf16.mxu0 %v669
    %842 = vmatpush2.bf16.msra.mxu0 %v668
    %843 = vmatprep.mubr.bf16.mxu0 %v343
    %844 = vmatmul.mubr.bf16.gmra.mxu0 %v342
    %v845 = vpop.f32.mrf.mxu0
    %v846 = vadd.f32 %v783, %v845
    %v847 = vpop.f32.mrf.mxu0
    %v848 = vadd.f32 %v785, %v847
    %v849 = vpop.f32.mrf.mxu0
    %v850 = vadd.f32 %v787, %v849
    %v851 = vpop.f32.mrf.mxu0
    %v852 = vadd.f32 %v789, %v851
    %853 = vmatprep.mubr.bf16.mxu0 %v347
    %854 = vmatmul.mubr.bf16.gmra.mxu0 %v346
    %v855 = vpop.f32.mrf.mxu0
    %v856 = vadd.f32 %v793, %v855
    %v857 = vpop.f32.mrf.mxu0
    %v858 = vadd.f32 %v795, %v857
    %v859 = vpop.f32.mrf.mxu0
    %v860 = vadd.f32 %v797, %v859
    %v861 = vpop.f32.mrf.mxu0
    %v862 = vadd.f32 %v799, %v861
    %863 = vmatprep.mubr.bf16.mxu0 %v351
    %864 = vmatmul.mubr.bf16.gmra.mxu0 %v350
    %v865 = vpop.f32.mrf.mxu0
    %v866 = vadd.f32 %v803, %v865
    %v867 = vpop.f32.mrf.mxu0
    %v868 = vadd.f32 %v805, %v867
    %v869 = vpop.f32.mrf.mxu0
    %v870 = vadd.f32 %v807, %v869
    %v871 = vpop.f32.mrf.mxu0
    %v872 = vadd.f32 %v809, %v871
    %873 = vdwg.mxu0
    %v874 = vmax.f32 %v846, 0.0
    %v875 = vmax.f32 %v848, 0.0
    %v876 = vmax.f32 %v850, 0.0
    %v877 = vmax.f32 %v852, 0.0
    %v878 = vmax.f32 %v856, 0.0
    %v879 = vmax.f32 %v858, 0.0
    %v880 = vmax.f32 %v860, 0.0
    %v881 = vmax.f32 %v862, 0.0
    %v882 = vmax.f32 %v866, 0.0
    %v883 = vmax.f32 %v868, 0.0
    %v884 = vmax.f32 %v870, 0.0
    %v885 = vmax.f32 %v872, 0.0
    %v886 = vpack.c.bf16 %v876, %v874
    %v887 = vpack.c.bf16 %v877, %v875
    %v888 = vpack.c.bf16 %v880, %v878
    %v889 = vpack.c.bf16 %v881, %v879
    %v890 = vpack.c.bf16 %v884, %v882
    %v891 = vpack.c.bf16 %v885, %v883
    %v892 = vld [vmem:[%s5] sm:$0xf]
    %v893 = vld [vmem:[%s5 + $0x4] sm:$0xf]
    %v894 = vld [vmem:[%s5 + $0x8] sm:$0xf]
    %v895 = vld [vmem:[%s5 + $0xc] sm:$0xf]
    %v896 = vld [vmem:[%s5 + $0x10] sm:$0xf]
    %v897 = vld [vmem:[%s5 + $0x14] sm:$0xf]
    %v898 = vld [vmem:[%s5 + $0x18] sm:$0xf]
    %v899 = vld [vmem:[%s5 + $0x1c] sm:$0xf]
    %v900 = vld [vmem:[%s5 + $0x20] sm:$0xf]
    %v901 = vld [vmem:[%s5 + $0x24] sm:$0xf]
    %v902 = vld [vmem:[%s5 + $0x28] sm:$0xf]
    %v903 = vld [vmem:[%s5 + $0x2c] sm:$0xf]
    %v904 = vld [vmem:[%s5 + $0x30] sm:$0xf]
    %v905 = vld [vmem:[%s5 + $0x34] sm:$0xf]
    %v906 = vld [vmem:[%s5 + $0x38] sm:$0xf]
    %v907 = vld [vmem:[%s5 + $0x3c] sm:$0xf]
    %v908 = vld [vmem:[%s5 + $0x40] sm:$0xf]
    %v909 = vld [vmem:[%s5 + $0x44] sm:$0xf]
    %v910 = vld [vmem:[%s5 + $0x48] sm:$0xf]
    %v911 = vld [vmem:[%s5 + $0x4c] sm:$0xf]
    %v912 = vld [vmem:[%s5 + $0x50] sm:$0xf]
    %v913 = vld [vmem:[%s5 + $0x54] sm:$0xf]
    %v914 = vld [vmem:[%s5 + $0x58] sm:$0xf]
    %v915 = vld [vmem:[%s5 + $0x5c] sm:$0xf]
    %v916 = vld [vmem:[%s5 + $0x60] sm:$0xf]
    %v917 = vld [vmem:[%s5 + $0x64] sm:$0xf]
    %v918 = vld [vmem:[%s5 + $0x68] sm:$0xf]
    %v919 = vld [vmem:[%s5 + $0x6c] sm:$0xf]
    %v920 = vld [vmem:[%s5 + $0x70] sm:$0xf]
    %v921 = vld [vmem:[%s5 + $0x74] sm:$0xf]
    %v922 = vld [vmem:[%s5 + $0x78] sm:$0xf]
    %v923 = vld [vmem:[%s5 + $0x7c] sm:$0xf]
    %v924 = vld [vmem:[%s6] sm:$0x1]
    %v926 = vlaneseq
    %v927 = vshrl.u32 %v926, 7
    %v928 = vsub.s32 0, %v927
    %v929 = vrot.slane %v924, %v928
    %v963 = vunpack.c.l.b16 %v892
    %v964 = vunpack.c.l.b16 %v893
    %v965 = vunpack.c.l.b16 %v894
    %v966 = vunpack.c.l.b16 %v895
    %v967 = vunpack.c.l.b16 %v896
    %v968 = vunpack.c.l.b16 %v897
    %v969 = vunpack.c.l.b16 %v898
    %v970 = vunpack.c.l.b16 %v899
    %v971 = vunpack.c.l.b16 %v900
    %v972 = vunpack.c.l.b16 %v901
    %v973 = vunpack.c.l.b16 %v902
    %v974 = vunpack.c.l.b16 %v903
    %v975 = vunpack.c.l.b16 %v904
    %v976 = vunpack.c.l.b16 %v905
    %v977 = vunpack.c.l.b16 %v906
    %v978 = vunpack.c.l.b16 %v907
    %v979 = vunpack.c.l.b16 %v908
    %v980 = vunpack.c.l.b16 %v909
    %v981 = vunpack.c.l.b16 %v910
    %v982 = vunpack.c.l.b16 %v911
    %v983 = vunpack.c.l.b16 %v912
    %v984 = vunpack.c.l.b16 %v913
    %v985 = vunpack.c.l.b16 %v914
    %v986 = vunpack.c.l.b16 %v915
    %v987 = vunpack.c.l.b16 %v916
    %v988 = vunpack.c.l.b16 %v917
    %v989 = vunpack.c.l.b16 %v918
    %v990 = vunpack.c.l.b16 %v919
    %v991 = vunpack.c.l.b16 %v920
    %v992 = vunpack.c.l.b16 %v921
    %v993 = vunpack.c.l.b16 %v922
    %v994 = vunpack.c.l.b16 %v923
    %v995 = vpack.c.b16 %v964, %v963
    %v996 = vpack.c.b16 %v966, %v965
    %v997 = vpack.c.b16 %v968, %v967
    %v998 = vpack.c.b16 %v970, %v969
    %v999 = vpack.c.b16 %v972, %v971
    %v1000 = vpack.c.b16 %v974, %v973
    %v1001 = vpack.c.b16 %v976, %v975
    %v1002 = vpack.c.b16 %v978, %v977
    %v1003 = vpack.c.b16 %v980, %v979
    %v1004 = vpack.c.b16 %v982, %v981
    %v1005 = vpack.c.b16 %v984, %v983
    %v1006 = vpack.c.b16 %v986, %v985
    %v1007 = vpack.c.b16 %v988, %v987
    %v1008 = vpack.c.b16 %v990, %v989
    %v1009 = vpack.c.b16 %v992, %v991
    %v1010 = vpack.c.b16 %v994, %v993
    %1027 = vmatprep.subr.bf16.mxu0 0
    %1028 = vmatpush1.bf16.msra.mxu0 %v1002
    %1029 = vmatprep.subr.bf16.mxu0 0
    %1030 = vmatpush1.bf16.msra.mxu0 %v1001
    %1031 = vmatprep.subr.bf16.mxu0 0
    %1032 = vmatpush1.bf16.msra.mxu0 %v1000
    %1033 = vmatprep.subr.bf16.mxu0 0
    %1034 = vmatpush1.bf16.msra.mxu0 %v999
    %1035 = vmatprep.subr.bf16.mxu0 0
    %1036 = vmatpush1.bf16.msra.mxu0 %v998
    %1037 = vmatprep.subr.bf16.mxu0 0
    %1038 = vmatpush1.bf16.msra.mxu0 %v997
    %1039 = vmatprep.subr.bf16.mxu0 0
    %1040 = vmatpush1.bf16.msra.mxu0 %v996
    %1041 = vmatprep.subr.bf16.mxu0 0
    %1042 = vmatpush1.bf16.msra.mxu0 %v995
    %1043 = vmatprep.subr.bf16.mxu0 0
    %1044 = vmatpush2.bf16.msra.mxu0 %v1010
    %1045 = vmatprep.subr.bf16.mxu0 0
    %1046 = vmatpush2.bf16.msra.mxu0 %v1009
    %1047 = vmatprep.subr.bf16.mxu0 0
    %1048 = vmatpush2.bf16.msra.mxu0 %v1008
    %1049 = vmatprep.subr.bf16.mxu0 0
    %1050 = vmatpush2.bf16.msra.mxu0 %v1007
    %1051 = vmatprep.subr.bf16.mxu0 0
    %1052 = vmatpush2.bf16.msra.mxu0 %v1006
    %1053 = vmatprep.subr.bf16.mxu0 0
    %1054 = vmatpush2.bf16.msra.mxu0 %v1005
    %1055 = vmatprep.subr.bf16.mxu0 0
    %1056 = vmatpush2.bf16.msra.mxu0 %v1004
    %1057 = vmatprep.subr.bf16.mxu0 0
    %1058 = vmatpush2.bf16.msra.mxu0 %v1003
    %1059 = vmatprep.mubr.bf16.mxu0 %v887
    %1060 = vmatmul.mubr.bf16.gmra.mxu0 %v886
    %v1061 = vpop.f32.mrf.mxu0
    %v1062 = vadd.f32 %v929, %v1061
    %v1063 = vpop.f32.mrf.mxu0
    %v1064 = vpop.f32.mrf.mxu0
    %v1065 = vadd.f32 %v929, %v1064
    %v1066 = vpop.f32.mrf.mxu0
    %1067 = vmatprep.mubr.bf16.mxu0 %v889
    %1068 = vmatmul.mubr.bf16.gmra.mxu0 %v888
    %v1069 = vpop.f32.mrf.mxu0
    %v1070 = vadd.f32 %v929, %v1069
    %v1071 = vpop.f32.mrf.mxu0
    %v1072 = vpop.f32.mrf.mxu0
    %v1073 = vadd.f32 %v929, %v1072
    %v1074 = vpop.f32.mrf.mxu0
    %1075 = vmatprep.mubr.bf16.mxu0 %v891
    %1076 = vmatmul.mubr.bf16.gmra.mxu0 %v890
    %v1077 = vpop.f32.mrf.mxu0
    %v1078 = vadd.f32 %v929, %v1077
    %v1079 = vpop.f32.mrf.mxu0
    %v1080 = vpop.f32.mrf.mxu0
    %v1081 = vadd.f32 %v929, %v1080
    %v1082 = vpop.f32.mrf.mxu0
    %1083 = vdwg.mxu0
    %vm1084 = vcmask 261120
    %1085 = vst.msk [vmem:[%s7] sm:$0xff] %vm1084, %v1062
    %1086 = vst.msk [vmem:[%s7 + $0x8] sm:$0xff] %vm1084, %v1065
    %1087 = vst.msk [vmem:[%s7 + $0x10] sm:$0xff] %vm1084, %v1070
    %1088 = vst.msk [vmem:[%s7 + $0x18] sm:$0xff] %vm1084, %v1073
    %1089 = vst.msk [vmem:[%s7 + $0x20] sm:$0xff] %vm1084, %v1078
    %1090 = vst.msk [vmem:[%s7 + $0x28] sm:$0xff] %vm1084, %v1081
    // Predicated region
    $region34: #{tpu_custom_call.1} parent=1 // pred_check
      _
    $region35: #{tpu_custom_call.1} parent=1 // pred_check_branch
      %1092 = sbr.rel (0) target = $region37
    $region36: #{tpu_custom_call.1} parent=1 // pred_region
      _
    $region37: #{tpu_custom_call.1} parent=1 // pred_fallthru
      _
    // Predicated region
    $region38: #{tpu_custom_call.1} parent=1 // pred_check
      _
    $region39: #{tpu_custom_call.1} parent=1 // pred_check_branch
      %1094 = sbr.rel (0) target = $region41
    $region40: #{tpu_custom_call.1} parent=1 // pred_region
      _
    $region41: #{tpu_custom_call.1} parent=1 // pred_fallthru
      _
    %1095 = vsyncpa [#allocation3], 1

// kernel: tpu_custom_call.1
$region0: #{tpu_custom_call.1}
  #allocation0 [shape = 'u32[]', space=smem, size = 0x4, offset = 0x4, fixed_abs, tag = 'smem constant byte address 0x4 - core index']
  #allocation1 [shape = 'u32[144,128]{1,0:T(1,128)}', space=vmem, size = 0x12000, scoped, tag = 'internal scratch']
  %s0 = inlined_call_operand.vmem [shape: bf16[48,64], index: 0, kind: input, shape index: {}]
  %s1 = inlined_call_operand.vmem [shape: bf16[64,512], index: 1, kind: input, shape index: {}]
  %s2 = inlined_call_operand.vmem [shape: f32[1,512], index: 2, kind: input, shape index: {}]
  %s3 = inlined_call_operand.hbm [shape: bf16[512,256], index: 3, kind: input, shape index: {}]
  %s4 = inlined_call_operand.vmem [shape: f32[1,256], index: 4, kind: input, shape index: {}]
  %s5 = inlined_call_operand.vmem [shape: bf16[256,32], index: 5, kind: input, shape index: {}]
  %s6 = inlined_call_operand.vmem [shape: f32[1,32], index: 6, kind: input, shape index: {}]
  %s7 = inlined_call_operand.vmem [shape: f32[48,32], index: 7, kind: output, shape index: {}]
  %s8 = sld [smem:[#allocation0]]
  $region42: #{tpu_custom_call.1} parent=0
    _
  %s10 = ssub.s32 1, %s8
  %s11 = scalar_select 0, %s10, %s8
  $region1: #{tpu_custom_call.1} parent=0
    #allocation2 [shape = 'u8[262144]{0}', space=vmem, size = 0x40000, scoped, tag = 'input window, operand 3, single buffered']
    #allocation3 [shape = 's32[1]{0}', space=sflag, size = 0x4, scoped, tag = 'scoped memory for tpu_custom_call.1']
    %12 = vsyncpa [#allocation3], 0
    // Predicated region
    $region2: #{tpu_custom_call.1} parent=1 // pred_check
      _
    $region3: #{tpu_custom_call.1} parent=1 // pred_check_branch
      %14 = sbr.rel (0) target = $region5
    $region4: #{tpu_custom_call.1} parent=1 // pred_region
      _
    $region5: #{tpu_custom_call.1} parent=1 // pred_fallthru
      _
    // Predicated region
    $region6: #{tpu_custom_call.1} parent=1 // pred_check
      _
    $region7: #{tpu_custom_call.1} parent=1 // pred_check_branch
      %16 = sbr.rel (0) target = $region9
    $region8: #{tpu_custom_call.1} parent=1 // pred_region
      _
    $region9: #{tpu_custom_call.1} parent=1 // pred_fallthru
      _
    // Predicated region
    $region10: #{tpu_custom_call.1} parent=1 // pred_check
      _
    $region11: #{tpu_custom_call.1} parent=1 // pred_check_branch
      %18 = sbr.rel (0) target = $region13
    $region12: #{tpu_custom_call.1} parent=1 // pred_region
      _
    $region13: #{tpu_custom_call.1} parent=1 // pred_fallthru
      _
    // Predicated region
    $region14: #{tpu_custom_call.1} parent=1 // pred_check
      _
    $region15: #{tpu_custom_call.1} parent=1 // pred_check_branch
      %20 = sbr.rel (0) target = $region17
    $region16: #{tpu_custom_call.1} parent=1 // pred_region
      %s22 = ssub.s32 8192, 8192
      %23 = vsyncadd [#allocation3], %s22
      %s24 = sshll.u32 [#allocation2], 4
      %s25 = int_to_ptr.vmem [resolvable:$true] %s24
      %30 = dma.hbm_to_vmem [thread:$0]  %s3, 8192, %s25, [#allocation3], 128, 128, 8
    $region17: #{tpu_custom_call.1} parent=1 // pred_fallthru
      _
    // Predicated region
    $region18: #{tpu_custom_call.1} parent=1 // pred_check
      _
    $region19: #{tpu_custom_call.1} parent=1 // pred_check_branch
      %32 = sbr.rel (0) target = $region21
    $region20: #{tpu_custom_call.1} parent=1 // pred_region
      _
    $region21: #{tpu_custom_call.1} parent=1 // pred_fallthru
      _
    // Predicated region
    $region22: #{tpu_custom_call.1} parent=1 // pred_check
      _
    $region23: #{tpu_custom_call.1} parent=1 // pred_check_branch
      %34 = sbr.rel (0) target = $region25
    $region24: #{tpu_custom_call.1} parent=1 // pred_region
      _
    $region25: #{tpu_custom_call.1} parent=1 // pred_fallthru
      _
    // Predicated region
    $region26: #{tpu_custom_call.1} parent=1 // pred_check
      _
    $region27: #{tpu_custom_call.1} parent=1 // pred_check_branch
      %36 = sbr.rel (0) target = $region29
    $region28: #{tpu_custom_call.1} parent=1 // pred_region
      _
    $region29: #{tpu_custom_call.1} parent=1 // pred_fallthru
      _
    // Predicated region
    $region30: #{tpu_custom_call.1} parent=1 // pred_check
      _
    $region31: #{tpu_custom_call.1} parent=1 // pred_check_branch
      %38 = sbr.rel (0) target = $region33
    $region32: #{tpu_custom_call.1} parent=1 // pred_region
      %39 = dma.done [#allocation3], 8192
    $region33: #{tpu_custom_call.1} parent=1 // pred_fallthru
      _
    %v41 = vld [vmem:[%s0] sm:$0xf]
    %v42 = vld [vmem:[%s0 + $0x4] sm:$0xf]
    %v43 = vld [vmem:[%s0 + $0x8] sm:$0xf]
    %v44 = vld [vmem:[%s0 + $0xc] sm:$0xf]
    %v45 = vld [vmem:[%s0 + $0x10] sm:$0xf]
    %v46 = vld [vmem:[%s0 + $0x14] sm:$0xf]
    %v47 = vld [vmem:[%s1] sm:$0xff]
    %v48 = vld [vmem:[%s1 + $0x8] sm:$0xff]
    %v49 = vld [vmem:[%s1 + $0x10] sm:$0xff]
    %v50 = vld [vmem:[%s1 + $0x18] sm:$0xff]
    %v51 = vld [vmem:[%s1 + $0x20] sm:$0xff]
    %v52 = vld [vmem:[%s1 + $0x28] sm:$0xff]
    %v53 = vld [vmem:[%s1 + $0x30] sm:$0xff]
    %v54 = vld [vmem:[%s1 + $0x38] sm:$0xff]
    %v55 = vld [vmem:[%s1 + $0x40] sm:$0xff]
    %v56 = vld [vmem:[%s1 + $0x48] sm:$0xff]
    %v57 = vld [vmem:[%s1 + $0x50] sm:$0xff]
    %v58 = vld [vmem:[%s1 + $0x58] sm:$0xff]
    %v59 = vld [vmem:[%s1 + $0x60] sm:$0xff]
    %v60 = vld [vmem:[%s1 + $0x68] sm:$0xff]
    %v61 = vld [vmem:[%s1 + $0x70] sm:$0xff]
    %v62 = vld [vmem:[%s1 + $0x78] sm:$0xff]
    %v63 = vld [vmem:[%s2] sm:$0xf]
    %v65 = vlaneseq
    %v66 = vshrl.u32 %v65, 7
    %v67 = vsub.s32 0, %v66
    %v68 = vrot.slane %v63, %v67
    %v69 = vlaneseq
    %v70 = vshrl.u32 %v69, 7
    %v71 = vsub.s32 1, %v70
    %v72 = vrot.slane %v63, %v71
    %v73 = vlaneseq
    %v74 = vshrl.u32 %v73, 7
    %v75 = vsub.s32 2, %v74
    %v76 = vrot.slane %v63, %v75
    %v77 = vlaneseq
    %v78 = vshrl.u32 %v77, 7
    %v79 = vsub.s32 3, %v78
    %v80 = vrot.slane %v63, %v79
    %v91 = vunpack.c.l.b16 %v41
    %v92 = vunpack.c.l.b16 %v42
    %v93 = vunpack.c.l.b16 %v43
    %v94 = vunpack.c.l.b16 %v44
    %v95 = vunpack.c.l.b16 %v45
    %v96 = vunpack.c.l.b16 %v46
    %v97 = vpack.c.b16 %v92, %v91
    %v98 = vpack.c.b16 %v94, %v93
    %v99 = vpack.c.b16 %v96, %v95
    %v116 = vunpack.c.l.b16 %v47
    %v117 = vunpack.c.h.b16 %v47
    %v118 = vunpack.c.l.b16 %v48
    %v119 = vunpack.c.h.b16 %v48
    %v120 = vunpack.c.l.b16 %v49
    %v121 = vunpack.c.h.b16 %v49
    %v122 = vunpack.c.l.b16 %v50
    %v123 = vunpack.c.h.b16 %v50
    %v124 = vunpack.c.l.b16 %v51
    %v125 = vunpack.c.h.b16 %v51
    %v126 = vunpack.c.l.b16 %v52
    %v127 = vunpack.c.h.b16 %v52
    %v128 = vunpack.c.l.b16 %v53
    %v129 = vunpack.c.h.b16 %v53
    %v130 = vunpack.c.l.b16 %v54
    %v131 = vunpack.c.h.b16 %v54
    %v132 = vunpack.c.l.b16 %v55
    %v133 = vunpack.c.h.b16 %v55
    %v134 = vunpack.c.l.b16 %v56
    %v135 = vunpack.c.h.b16 %v56
    %v136 = vunpack.c.l.b16 %v57
    %v137 = vunpack.c.h.b16 %v57
    %v138 = vunpack.c.l.b16 %v58
    %v139 = vunpack.c.h.b16 %v58
    %v140 = vunpack.c.l.b16 %v59
    %v141 = vunpack.c.h.b16 %v59
    %v142 = vunpack.c.l.b16 %v60
    %v143 = vunpack.c.h.b16 %v60
    %v144 = vunpack.c.l.b16 %v61
    %v145 = vunpack.c.h.b16 %v61
    %v146 = vunpack.c.l.b16 %v62
    %v147 = vunpack.c.h.b16 %v62
    %v148 = vpack.c.b16 %v120, %v116
    %v149 = vpack.c.b16 %v121, %v117
    %v150 = vpack.c.b16 %v122, %v118
    %v151 = vpack.c.b16 %v123, %v119
    %v152 = vpack.c.b16 %v128, %v124
    %v153 = vpack.c.b16 %v129, %v125
    %v154 = vpack.c.b16 %v130, %v126
    %v155 = vpack.c.b16 %v131, %v127
    %v156 = vpack.c.b16 %v136, %v132
    %v157 = vpack.c.b16 %v137, %v133
    %v158 = vpack.c.b16 %v138, %v134
    %v159 = vpack.c.b16 %v139, %v135
    %v160 = vpack.c.b16 %v144, %v140
    %v161 = vpack.c.b16 %v145, %v141
    %v162 = vpack.c.b16 %v146, %v142
    %v163 = vpack.c.b16 %v147, %v143
    %vm180 = vcmask 523264
    %v182 = vsel %vm180, %v97, 0
    %v185 = vsel %vm180, %v98, 0
    %v188 = vsel %vm180, %v99, 0
    %190 = vmatprep.subr.bf16.mxu0 0
    %191 = vmatpush1.bf16.msra.mxu0 0
    %192 = vmatprep.subr.bf16.mxu0 0
    %193 = vmatpush1.bf16.msra.mxu0 0
    %194 = vmatprep.subr.bf16.mxu0 0
    %195 = vmatpush1.bf16.msra.mxu0 0
    %196 = vmatprep.subr.bf16.mxu0 0
    %197 = vmatpush1.bf16.msra.mxu0 0
    %198 = vmatprep.subr.bf16.mxu0 %v161
    %199 = vmatpush1.bf16.msra.mxu0 %v160
    %200 = vmatprep.subr.bf16.mxu0 %v157
    %201 = vmatpush1.bf16.msra.mxu0 %v156
    %202 = vmatprep.subr.bf16.mxu0 %v153
    %203 = vmatpush1.bf16.msra.mxu0 %v152
    %204 = vmatprep.subr.bf16.mxu0 %v149
    %205 = vmatpush1.bf16.msra.mxu0 %v148
    %206 = vmatprep.subr.bf16.mxu0 0
    %207 = vmatpush2.bf16.msra.mxu0 0
    %208 = vmatprep.subr.bf16.mxu0 0
    %209 = vmatpush2.bf16.msra.mxu0 0
    %210 = vmatprep.subr.bf16.mxu0 0
    %211 = vmatpush2.bf16.msra.mxu0 0
    %212 = vmatprep.subr.bf16.mxu0 0
    %213 = vmatpush2.bf16.msra.mxu0 0
    %214 = vmatprep.subr.bf16.mxu0 0
    %215 = vmatpush2.bf16.msra.mxu0 0
    %216 = vmatprep.subr.bf16.mxu0 0
    %217 = vmatpush2.bf16.msra.mxu0 0
    %218 = vmatprep.subr.bf16.mxu0 0
    %219 = vmatpush2.bf16.msra.mxu0 0
    %220 = vmatprep.subr.bf16.mxu0 0
    %221 = vmatpush2.bf16.msra.mxu0 0
    %222 = vmatprep.mubr.bf16.mxu0 0
    %223 = vmatmul.mubr.bf16.gmra.mxu0 %v182
    %v224 = vpop.f32.mrf.mxu0
    %v225 = vadd.f32 %v68, %v224
    %v226 = vpop.f32.mrf.mxu0
    %v227 = vadd.f32 %v72, %v226
    %v228 = vpop.f32.mrf.mxu0
    %v229 = vadd.f32 %v68, %v228
    %v230 = vpop.f32.mrf.mxu0
    %v231 = vadd.f32 %v72, %v230
    %232 = vmatprep.mubr.bf16.mxu0 0
    %233 = vmatmul.mubr.bf16.gmra.mxu0 %v185
    %v234 = vpop.f32.mrf.mxu0
    %v235 = vadd.f32 %v68, %v234
    %v236 = vpop.f32.mrf.mxu0
    %v237 = vadd.f32 %v72, %v236
    %v238 = vpop.f32.mrf.mxu0
    %v239 = vadd.f32 %v68, %v238
    %v240 = vpop.f32.mrf.mxu0
    %v241 = vadd.f32 %v72, %v240
    %242 = vmatprep.mubr.bf16.mxu0 0
    %243 = vmatmul.mubr.bf16.gmra.mxu0 %v188
    %v244 = vpop.f32.mrf.mxu0
    %v245 = vadd.f32 %v68, %v244
    %v246 = vpop.f32.mrf.mxu0
    %v247 = vadd.f32 %v72, %v246
    %v248 = vpop.f32.mrf.mxu0
    %v249 = vadd.f32 %v68, %v248
    %v250 = vpop.f32.mrf.mxu0
    %v251 = vadd.f32 %v72, %v250
    %252 = vdwg.mxu0
    %253 = vmatprep.subr.bf16.mxu0 0
    %254 = vmatpush1.bf16.msra.mxu0 0
    %255 = vmatprep.subr.bf16.mxu0 0
    %256 = vmatpush1.bf16.msra.mxu0 0
    %257 = vmatprep.subr.bf16.mxu0 0
    %258 = vmatpush1.bf16.msra.mxu0 0
    %259 = vmatprep.subr.bf16.mxu0 0
    %260 = vmatpush1.bf16.msra.mxu0 0
    %261 = vmatprep.subr.bf16.mxu0 %v163
    %262 = vmatpush1.bf16.msra.mxu0 %v162
    %263 = vmatprep.subr.bf16.mxu0 %v159
    %264 = vmatpush1.bf16.msra.mxu0 %v158
    %265 = vmatprep.subr.bf16.mxu0 %v155
    %266 = vmatpush1.bf16.msra.mxu0 %v154
    %267 = vmatprep.subr.bf16.mxu0 %v151
    %268 = vmatpush1.bf16.msra.mxu0 %v150
    %269 = vmatprep.subr.bf16.mxu0 0
    %270 = vmatpush2.bf16.msra.mxu0 0
    %271 = vmatprep.subr.bf16.mxu0 0
    %272 = vmatpush2.bf16.msra.mxu0 0
    %273 = vmatprep.subr.bf16.mxu0 0
    %274 = vmatpush2.bf16.msra.mxu0 0
    %275 = vmatprep.subr.bf16.mxu0 0
    %276 = vmatpush2.bf16.msra.mxu0 0
    %277 = vmatprep.subr.bf16.mxu0 0
    %278 = vmatpush2.bf16.msra.mxu0 0
    %279 = vmatprep.subr.bf16.mxu0 0
    %280 = vmatpush2.bf16.msra.mxu0 0
    %281 = vmatprep.subr.bf16.mxu0 0
    %282 = vmatpush2.bf16.msra.mxu0 0
    %283 = vmatprep.subr.bf16.mxu0 0
    %284 = vmatpush2.bf16.msra.mxu0 0
    %285 = vmatprep.mubr.bf16.mxu0 0
    %286 = vmatmul.mubr.bf16.gmra.mxu0 %v182
    %v287 = vpop.f32.mrf.mxu0
    %v288 = vadd.f32 %v76, %v287
    %v289 = vpop.f32.mrf.mxu0
    %v290 = vadd.f32 %v80, %v289
    %v291 = vpop.f32.mrf.mxu0
    %v292 = vadd.f32 %v76, %v291
    %v293 = vpop.f32.mrf.mxu0
    %v294 = vadd.f32 %v80, %v293
    %295 = vmatprep.mubr.bf16.mxu0 0
    %296 = vmatmul.mubr.bf16.gmra.mxu0 %v185
    %v297 = vpop.f32.mrf.mxu0
    %v298 = vadd.f32 %v76, %v297
    %v299 = vpop.f32.mrf.mxu0
    %v300 = vadd.f32 %v80, %v299
    %v301 = vpop.f32.mrf.mxu0
    %v302 = vadd.f32 %v76, %v301
    %v303 = vpop.f32.mrf.mxu0
    %v304 = vadd.f32 %v80, %v303
    %305 = vmatprep.mubr.bf16.mxu0 0
    %306 = vmatmul.mubr.bf16.gmra.mxu0 %v188
    %v307 = vpop.f32.mrf.mxu0
    %v308 = vadd.f32 %v76, %v307
    %v309 = vpop.f32.mrf.mxu0
    %v310 = vadd.f32 %v80, %v309
    %v311 = vpop.f32.mrf.mxu0
    %v312 = vadd.f32 %v76, %v311
    %v313 = vpop.f32.mrf.mxu0
    %v314 = vadd.f32 %v80, %v313
    %315 = vdwg.mxu0
    %v316 = vmax.f32 %v225, 0.0
    %v317 = vmax.f32 %v227, 0.0
    %v318 = vmax.f32 %v288, 0.0
    %v319 = vmax.f32 %v290, 0.0
    %v320 = vmax.f32 %v229, 0.0
    %v321 = vmax.f32 %v231, 0.0
    %v322 = vmax.f32 %v292, 0.0
    %v323 = vmax.f32 %v294, 0.0
    %v324 = vmax.f32 %v235, 0.0
    %v325 = vmax.f32 %v237, 0.0
    %v326 = vmax.f32 %v298, 0.0
    %v327 = vmax.f32 %v300, 0.0
    %v328 = vmax.f32 %v239, 0.0
    %v329 = vmax.f32 %v241, 0.0
    %v330 = vmax.f32 %v302, 0.0
    %v331 = vmax.f32 %v304, 0.0
    %v332 = vmax.f32 %v245, 0.0
    %v333 = vmax.f32 %v247, 0.0
    %v334 = vmax.f32 %v308, 0.0
    %v335 = vmax.f32 %v310, 0.0
    %v336 = vmax.f32 %v249, 0.0
    %v337 = vmax.f32 %v251, 0.0
    %v338 = vmax.f32 %v312, 0.0
    %v339 = vmax.f32 %v314, 0.0
    %v340 = vpack.c.bf16 %v320, %v316
    %v341 = vpack.c.bf16 %v321, %v317
    %v342 = vpack.c.bf16 %v322, %v318
    %v343 = vpack.c.bf16 %v323, %v319
    %v344 = vpack.c.bf16 %v328, %v324
    %v345 = vpack.c.bf16 %v329, %v325
    %v346 = vpack.c.bf16 %v330, %v326
    %v347 = vpack.c.bf16 %v331, %v327
    %v348 = vpack.c.bf16 %v336, %v332
    %v349 = vpack.c.bf16 %v337, %v333
    %v350 = vpack.c.bf16 %v338, %v334
    %v351 = vpack.c.bf16 %v339, %v335
    %v352 = vld [vmem:[#allocation2] sm:$0xff]
    %v353 = vld [vmem:[#allocation2 + $0x8] sm:$0xff]
    %v354 = vld [vmem:[#allocation2 + $0x10] sm:$0xff]
    %v355 = vld [vmem:[#allocation2 + $0x18] sm:$0xff]
    %v356 = vld [vmem:[#allocation2 + $0x20] sm:$0xff]
    %v357 = vld [vmem:[#allocation2 + $0x28] sm:$0xff]
    %v358 = vld [vmem:[#allocation2 + $0x30] sm:$0xff]
    %v359 = vld [vmem:[#allocation2 + $0x38] sm:$0xff]
    %v360 = vld [vmem:[#allocation2 + $0x40] sm:$0xff]
    %v361 = vld [vmem:[#allocation2 + $0x48] sm:$0xff]
    %v362 = vld [vmem:[#allocation2 + $0x50] sm:$0xff]
    %v363 = vld [vmem:[#allocation2 + $0x58] sm:$0xff]
    %v364 = vld [vmem:[#allocation2 + $0x60] sm:$0xff]
    %v365 = vld [vmem:[#allocation2 + $0x68] sm:$0xff]
    %v366 = vld [vmem:[#allocation2 + $0x70] sm:$0xff]
    %v367 = vld [vmem:[#allocation2 + $0x78] sm:$0xff]
    %v368 = vld [vmem:[#allocation2 + $0x80] sm:$0xff]
    %v369 = vld [vmem:[#allocation2 + $0x88] sm:$0xff]
    %v370 = vld [vmem:[#allocation2 + $0x90] sm:$0xff]
    %v371 = vld [vmem:[#allocation2 + $0x98] sm:$0xff]
    %v372 = vld [vmem:[#allocation2 + $0xa0] sm:$0xff]
    %v373 = vld [vmem:[#allocation2 + $0xa8] sm:$0xff]
    %v374 = vld [vmem:[#allocation2 + $0xb0] sm:$0xff]
    %v375 = vld [vmem:[#allocation2 + $0xb8] sm:$0xff]
    %v376 = vld [vmem:[#allocation2 + $0xc0] sm:$0xff]
    %v377 = vld [vmem:[#allocation2 + $0xc8] sm:$0xff]
    %v378 = vld [vmem:[#allocation2 + $0xd0] sm:$0xff]
    %v379 = vld [vmem:[#allocation2 + $0xd8] sm:$0xff]
    %v380 = vld [vmem:[#allocation2 + $0xe0] sm:$0xff]
    %v381 = vld [vmem:[#allocation2 + $0xe8] sm:$0xff]
    %v382 = vld [vmem:[#allocation2 + $0xf0] sm:$0xff]
    %v383 = vld [vmem:[#allocation2 + $0xf8] sm:$0xff]
    %v384 = vld [vmem:[#allocation2 + $0x100] sm:$0xff]
    %v385 = vld [vmem:[#allocation2 + $0x108] sm:$0xff]
    %v386 = vld [vmem:[#allocation2 + $0x110] sm:$0xff]
    %v387 = vld [vmem:[#allocation2 + $0x118] sm:$0xff]
    %v388 = vld [vmem:[#allocation2 + $0x120] sm:$0xff]
    %v389 = vld [vmem:[#allocation2 + $0x128] sm:$0xff]
    %v390 = vld [vmem:[#allocation2 + $0x130] sm:$0xff]
    %v391 = vld [vmem:[#allocation2 + $0x138] sm:$0xff]
    %v392 = vld [vmem:[#allocation2 + $0x140] sm:$0xff]
    %v393 = vld [vmem:[#allocation2 + $0x148] sm:$0xff]
    %v394 = vld [vmem:[#allocation2 + $0x150] sm:$0xff]
    %v395 = vld [vmem:[#allocation2 + $0x158] sm:$0xff]
    %v396 = vld [vmem:[#allocation2 + $0x160] sm:$0xff]
    %v397 = vld [vmem:[#allocation2 + $0x168] sm:$0xff]
    %v398 = vld [vmem:[#allocation2 + $0x170] sm:$0xff]
    %v399 = vld [vmem:[#allocation2 + $0x178] sm:$0xff]
    %v400 = vld [vmem:[#allocation2 + $0x180] sm:$0xff]
    %v401 = vld [vmem:[#allocation2 + $0x188] sm:$0xff]
    %v402 = vld [vmem:[#allocation2 + $0x190] sm:$0xff]
    %v403 = vld [vmem:[#allocation2 + $0x198] sm:$0xff]
    %v404 = vld [vmem:[#allocation2 + $0x1a0] sm:$0xff]
    %v405 = vld [vmem:[#allocation2 + $0x1a8] sm:$0xff]
    %v406 = vld [vmem:[#allocation2 + $0x1b0] sm:$0xff]
    %v407 = vld [vmem:[#allocation2 + $0x1b8] sm:$0xff]
    %v408 = vld [vmem:[#allocation2 + $0x1c0] sm:$0xff]
    %v409 = vld [vmem:[#allocation2 + $0x1c8] sm:$0xff]
    %v410 = vld [vmem:[#allocation2 + $0x1d0] sm:$0xff]
    %v411 = vld [vmem:[#allocation2 + $0x1d8] sm:$0xff]
    %v412 = vld [vmem:[#allocation2 + $0x1e0] sm:$0xff]
    %v413 = vld [vmem:[#allocation2 + $0x1e8] sm:$0xff]
    %v414 = vld [vmem:[#allocation2 + $0x1f0] sm:$0xff]
    %v415 = vld [vmem:[#allocation2 + $0x1f8] sm:$0xff]
    %v416 = vld [vmem:[%s4] sm:$0x3]
    %v418 = vlaneseq
    %v419 = vshrl.u32 %v418, 7
    %v420 = vsub.s32 0, %v419
    %v421 = vrot.slane %v416, %v420
    %v422 = vlaneseq
    %v423 = vshrl.u32 %v422, 7
    %v424 = vsub.s32 1, %v423
    %v425 = vrot.slane %v416, %v424
    %v492 = vunpack.c.l.b16 %v352
    %v493 = vunpack.c.h.b16 %v352
    %v494 = vunpack.c.l.b16 %v353
    %v495 = vunpack.c.h.b16 %v353
    %v496 = vunpack.c.l.b16 %v354
    %v497 = vunpack.c.h.b16 %v354
    %v498 = vunpack.c.l.b16 %v355
    %v499 = vunpack.c.h.b16 %v355
    %v500 = vunpack.c.l.b16 %v356
    %v501 = vunpack.c.h.b16 %v356
    %v502 = vunpack.c.l.b16 %v357
    %v503 = vunpack.c.h.b16 %v357
    %v504 = vunpack.c.l.b16 %v358
    %v505 = vunpack.c.h.b16 %v358
    %v506 = vunpack.c.l.b16 %v359
    %v507 = vunpack.c.h.b16 %v359
    %v508 = vunpack.c.l.b16 %v360
    %v509 = vunpack.c.h.b16 %v360
    %v510 = vunpack.c.l.b16 %v361
    %v511 = vunpack.c.h.b16 %v361
    %v512 = vunpack.c.l.b16 %v362
    %v513 = vunpack.c.h.b16 %v362
    %v514 = vunpack.c.l.b16 %v363
    %v515 = vunpack.c.h.b16 %v363
    %v516 = vunpack.c.l.b16 %v364
    %v517 = vunpack.c.h.b16 %v364
    %v518 = vunpack.c.l.b16 %v365
    %v519 = vunpack.c.h.b16 %v365
    %v520 = vunpack.c.l.b16 %v366
    %v521 = vunpack.c.h.b16 %v366
    %v522 = vunpack.c.l.b16 %v367
    %v523 = vunpack.c.h.b16 %v367
    %v524 = vunpack.c.l.b16 %v368
    %v525 = vunpack.c.h.b16 %v368
    %v526 = vunpack.c.l.b16 %v369
    %v527 = vunpack.c.h.b16 %v369
    %v528 = vunpack.c.l.b16 %v370
    %v529 = vunpack.c.h.b16 %v370
    %v530 = vunpack.c.l.b16 %v371
    %v531 = vunpack.c.h.b16 %v371
    %v532 = vunpack.c.l.b16 %v372
    %v533 = vunpack.c.h.b16 %v372
    %v534 = vunpack.c.l.b16 %v373
    %v535 = vunpack.c.h.b16 %v373
    %v536 = vunpack.c.l.b16 %v374
    %v537 = vunpack.c.h.b16 %v374
    %v538 = vunpack.c.l.b16 %v375
    %v539 = vunpack.c.h.b16 %v375
    %v540 = vunpack.c.l.b16 %v376
    %v541 = vunpack.c.h.b16 %v376
    %v542 = vunpack.c.l.b16 %v377
    %v543 = vunpack.c.h.b16 %v377
    %v544 = vunpack.c.l.b16 %v378
    %v545 = vunpack.c.h.b16 %v378
    %v546 = vunpack.c.l.b16 %v379
    %v547 = vunpack.c.h.b16 %v379
    %v548 = vunpack.c.l.b16 %v380
    %v549 = vunpack.c.h.b16 %v380
    %v550 = vunpack.c.l.b16 %v381
    %v551 = vunpack.c.h.b16 %v381
    %v552 = vunpack.c.l.b16 %v382
    %v553 = vunpack.c.h.b16 %v382
    %v554 = vunpack.c.l.b16 %v383
    %v555 = vunpack.c.h.b16 %v383
    %v556 = vunpack.c.l.b16 %v384
    %v557 = vunpack.c.h.b16 %v384
    %v558 = vunpack.c.l.b16 %v385
    %v559 = vunpack.c.h.b16 %v385
    %v560 = vunpack.c.l.b16 %v386
    %v561 = vunpack.c.h.b16 %v386
    %v562 = vunpack.c.l.b16 %v387
    %v563 = vunpack.c.h.b16 %v387
    %v564 = vunpack.c.l.b16 %v388
    %v565 = vunpack.c.h.b16 %v388
    %v566 = vunpack.c.l.b16 %v389
    %v567 = vunpack.c.h.b16 %v389
    %v568 = vunpack.c.l.b16 %v390
    %v569 = vunpack.c.h.b16 %v390
    %v570 = vunpack.c.l.b16 %v391
    %v571 = vunpack.c.h.b16 %v391
    %v572 = vunpack.c.l.b16 %v392
    %v573 = vunpack.c.h.b16 %v392
    %v574 = vunpack.c.l.b16 %v393
    %v575 = vunpack.c.h.b16 %v393
    %v576 = vunpack.c.l.b16 %v394
    %v577 = vunpack.c.h.b16 %v394
    %v578 = vunpack.c.l.b16 %v395
    %v579 = vunpack.c.h.b16 %v395
    %v580 = vunpack.c.l.b16 %v396
    %v581 = vunpack.c.h.b16 %v396
    %v582 = vunpack.c.l.b16 %v397
    %v583 = vunpack.c.h.b16 %v397
    %v584 = vunpack.c.l.b16 %v398
    %v585 = vunpack.c.h.b16 %v398
    %v586 = vunpack.c.l.b16 %v399
    %v587 = vunpack.c.h.b16 %v399
    %v588 = vunpack.c.l.b16 %v400
    %v589 = vunpack.c.h.b16 %v400
    %v590 = vunpack.c.l.b16 %v401
    %v591 = vunpack.c.h.b16 %v401
    %v592 = vunpack.c.l.b16 %v402
    %v593 = vunpack.c.h.b16 %v402
    %v594 = vunpack.c.l.b16 %v403
    %v595 = vunpack.c.h.b16 %v403
    %v596 = vunpack.c.l.b16 %v404
    %v597 = vunpack.c.h.b16 %v404
    %v598 = vunpack.c.l.b16 %v405
    %v599 = vunpack.c.h.b16 %v405
    %v600 = vunpack.c.l.b16 %v406
    %v601 = vunpack.c.h.b16 %v406
    %v602 = vunpack.c.l.b16 %v407
    %v603 = vunpack.c.h.b16 %v407
    %v604 = vunpack.c.l.b16 %v408
    %v605 = vunpack.c.h.b16 %v408
    %v606 = vunpack.c.l.b16 %v409
    %v607 = vunpack.c.h.b16 %v409
    %v608 = vunpack.c.l.b16 %v410
    %v609 = vunpack.c.h.b16 %v410
    %v610 = vunpack.c.l.b16 %v411
    %v611 = vunpack.c.h.b16 %v411
    %v612 = vunpack.c.l.b16 %v412
    %v613 = vunpack.c.h.b16 %v412
    %v614 = vunpack.c.l.b16 %v413
    %v615 = vunpack.c.h.b16 %v413
    %v616 = vunpack.c.l.b16 %v414
    %v617 = vunpack.c.h.b16 %v414
    %v618 = vunpack.c.l.b16 %v415
    %v619 = vunpack.c.h.b16 %v415
    %v620 = vpack.c.b16 %v494, %v492
    %v621 = vpack.c.b16 %v495, %v493
    %v622 = vpack.c.b16 %v498, %v496
    %v623 = vpack.c.b16 %v499, %v497
    %v624 = vpack.c.b16 %v502, %v500
    %v625 = vpack.c.b16 %v503, %v501
    %v626 = vpack.c.b16 %v506, %v504
    %v627 = vpack.c.b16 %v507, %v505
    %v628 = vpack.c.b16 %v510, %v508
    %v629 = vpack.c.b16 %v511, %v509
    %v630 = vpack.c.b16 %v514, %v512
    %v631 = vpack.c.b16 %v515, %v513
    %v632 = vpack.c.b16 %v518, %v516
    %v633 = vpack.c.b16 %v519, %v517
    %v634 = vpack.c.b16 %v522, %v520
    %v635 = vpack.c.b16 %v523, %v521
    %v636 = vpack.c.b16 %v526, %v524
    %v637 = vpack.c.b16 %v527, %v525
    %v638 = vpack.c.b16 %v530, %v528
    %v639 = vpack.c.b16 %v531, %v529
    %v640 = vpack.c.b16 %v534, %v532
    %v641 = vpack.c.b16 %v535, %v533
    %v642 = vpack.c.b16 %v538, %v536
    %v643 = vpack.c.b16 %v539, %v537
    %v644 = vpack.c.b16 %v542, %v540
    %v645 = vpack.c.b16 %v543, %v541
    %v646 = vpack.c.b16 %v546, %v544
    %v647 = vpack.c.b16 %v547, %v545
    %v648 = vpack.c.b16 %v550, %v548
    %v649 = vpack.c.b16 %v551, %v549
    %v650 = vpack.c.b16 %v554, %v552
    %v651 = vpack.c.b16 %v555, %v553
    %v652 = vpack.c.b16 %v558, %v556
    %v653 = vpack.c.b16 %v559, %v557
    %v654 = vpack.c.b16 %v562, %v560
    %v655 = vpack.c.b16 %v563, %v561
    %v656 = vpack.c.b16 %v566, %v564
    %v657 = vpack.c.b16 %v567, %v565
    %v658 = vpack.c.b16 %v570, %v568
    %v659 = vpack.c.b16 %v571, %v569
    %v660 = vpack.c.b16 %v574, %v572
    %v661 = vpack.c.b16 %v575, %v573
    %v662 = vpack.c.b16 %v578, %v576
    %v663 = vpack.c.b16 %v579, %v577
    %v664 = vpack.c.b16 %v582, %v580
    %v665 = vpack.c.b16 %v583, %v581
    %v666 = vpack.c.b16 %v586, %v584
    %v667 = vpack.c.b16 %v587, %v585
    %v668 = vpack.c.b16 %v590, %v588
    %v669 = vpack.c.b16 %v591, %v589
    %v670 = vpack.c.b16 %v594, %v592
    %v671 = vpack.c.b16 %v595, %v593
    %v672 = vpack.c.b16 %v598, %v596
    %v673 = vpack.c.b16 %v599, %v597
    %v674 = vpack.c.b16 %v602, %v600
    %v675 = vpack.c.b16 %v603, %v601
    %v676 = vpack.c.b16 %v606, %v604
    %v677 = vpack.c.b16 %v607, %v605
    %v678 = vpack.c.b16 %v610, %v608
    %v679 = vpack.c.b16 %v611, %v609
    %v680 = vpack.c.b16 %v614, %v612
    %v681 = vpack.c.b16 %v615, %v613
    %v682 = vpack.c.b16 %v618, %v616
    %v683 = vpack.c.b16 %v619, %v617
    %748 = vmatprep.subr.bf16.mxu0 %v635
    %749 = vmatpush1.bf16.msra.mxu0 %v634
    %750 = vmatprep.subr.bf16.mxu0 %v633
    %751 = vmatpush1.bf16.msra.mxu0 %v632
    %752 = vmatprep.subr.bf16.mxu0 %v631
    %753 = vmatpush1.bf16.msra.mxu0 %v630
    %754 = vmatprep.subr.bf16.mxu0 %v629
    %755 = vmatpush1.bf16.msra.mxu0 %v628
    %756 = vmatprep.subr.bf16.mxu0 %v627
    %757 = vmatpush1.bf16.msra.mxu0 %v626
    %758 = vmatprep.subr.bf16.mxu0 %v625
    %759 = vmatpush1.bf16.msra.mxu0 %v624
    %760 = vmatprep.subr.bf16.mxu0 %v623
    %761 = vmatpush1.bf16.msra.mxu0 %v622
    %762 = vmatprep.subr.bf16.mxu0 %v621
    %763 = vmatpush1.bf16.msra.mxu0 %v620
    %764 = vmatprep.subr.bf16.mxu0 %v651
    %765 = vmatpush2.bf16.msra.mxu0 %v650
    %766 = vmatprep.subr.bf16.mxu0 %v649
    %767 = vmatpush2.bf16.msra.mxu0 %v648
    %768 = vmatprep.subr.bf16.mxu0 %v647
    %769 = vmatpush2.bf16.msra.mxu0 %v646
    %770 = vmatprep.subr.bf16.mxu0 %v645
    %771 = vmatpush2.bf16.msra.mxu0 %v644
    %772 = vmatprep.subr.bf16.mxu0 %v643
    %773 = vmatpush2.bf16.msra.mxu0 %v642
    %774 = vmatprep.subr.bf16.mxu0 %v641
    %775 = vmatpush2.bf16.msra.mxu0 %v640
    %776 = vmatprep.subr.bf16.mxu0 %v639
    %777 = vmatpush2.bf16.msra.mxu0 %v638
    %778 = vmatprep.subr.bf16.mxu0 %v637
    %779 = vmatpush2.bf16.msra.mxu0 %v636
    %780 = vmatprep.mubr.bf16.mxu0 %v341
    %781 = vmatmul.mubr.bf16.gmra.mxu0 %v340
    %v782 = vpop.f32.mrf.mxu0
    %v783 = vadd.f32 %v421, %v782
    %v784 = vpop.f32.mrf.mxu0
    %v785 = vadd.f32 %v425, %v784
    %v786 = vpop.f32.mrf.mxu0
    %v787 = vadd.f32 %v421, %v786
    %v788 = vpop.f32.mrf.mxu0
    %v789 = vadd.f32 %v425, %v788
    %790 = vmatprep.mubr.bf16.mxu0 %v345
    %791 = vmatmul.mubr.bf16.gmra.mxu0 %v344
    %v792 = vpop.f32.mrf.mxu0
    %v793 = vadd.f32 %v421, %v792
    %v794 = vpop.f32.mrf.mxu0
    %v795 = vadd.f32 %v425, %v794
    %v796 = vpop.f32.mrf.mxu0
    %v797 = vadd.f32 %v421, %v796
    %v798 = vpop.f32.mrf.mxu0
    %v799 = vadd.f32 %v425, %v798
    %800 = vmatprep.mubr.bf16.mxu0 %v349
    %801 = vmatmul.mubr.bf16.gmra.mxu0 %v348
    %v802 = vpop.f32.mrf.mxu0
    %v803 = vadd.f32 %v421, %v802
    %v804 = vpop.f32.mrf.mxu0
    %v805 = vadd.f32 %v425, %v804
    %v806 = vpop.f32.mrf.mxu0
    %v807 = vadd.f32 %v421, %v806
    %v808 = vpop.f32.mrf.mxu0
    %v809 = vadd.f32 %v425, %v808
    %810 = vdwg.mxu0
    %811 = vmatprep.subr.bf16.mxu0 %v667
    %812 = vmatpush1.bf16.msra.mxu0 %v666
    %813 = vmatprep.subr.bf16.mxu0 %v665
    %814 = vmatpush1.bf16.msra.mxu0 %v664
    %815 = vmatprep.subr.bf16.mxu0 %v663
    %816 = vmatpush1.bf16.msra.mxu0 %v662
    %817 = vmatprep.subr.bf16.mxu0 %v661
    %818 = vmatpush1.bf16.msra.mxu0 %v660
    %819 = vmatprep.subr.bf16.mxu0 %v659
    %820 = vmatpush1.bf16.msra.mxu0 %v658
    %821 = vmatprep.subr.bf16.mxu0 %v657
    %822 = vmatpush1.bf16.msra.mxu0 %v656
    %823 = vmatprep.subr.bf16.mxu0 %v655
    %824 = vmatpush1.bf16.msra.mxu0 %v654
    %825 = vmatprep.subr.bf16.mxu0 %v653
    %826 = vmatpush1.bf16.msra.mxu0 %v652
    %827 = vmatprep.subr.bf16.mxu0 %v683
    %828 = vmatpush2.bf16.msra.mxu0 %v682
    %829 = vmatprep.subr.bf16.mxu0 %v681
    %830 = vmatpush2.bf16.msra.mxu0 %v680
    %831 = vmatprep.subr.bf16.mxu0 %v679
    %832 = vmatpush2.bf16.msra.mxu0 %v678
    %833 = vmatprep.subr.bf16.mxu0 %v677
    %834 = vmatpush2.bf16.msra.mxu0 %v676
    %835 = vmatprep.subr.bf16.mxu0 %v675
    %836 = vmatpush2.bf16.msra.mxu0 %v674
    %837 = vmatprep.subr.bf16.mxu0 %v673
    %838 = vmatpush2.bf16.msra.mxu0 %v672
    %839 = vmatprep.subr.bf16.mxu0 %v671
    %840 = vmatpush2.bf16.msra.mxu0 %v670
    %841 = vmatprep.subr.bf16.mxu0 %v669
    %842 = vmatpush2.bf16.msra.mxu0 %v668
    %843 = vmatprep.mubr.bf16.mxu0 %v343
    %844 = vmatmul.mubr.bf16.gmra.mxu0 %v342
    %v845 = vpop.f32.mrf.mxu0
    %v846 = vadd.f32 %v783, %v845
    %v847 = vpop.f32.mrf.mxu0
    %v848 = vadd.f32 %v785, %v847
    %v849 = vpop.f32.mrf.mxu0
    %v850 = vadd.f32 %v787, %v849
    %v851 = vpop.f32.mrf.mxu0
    %v852 = vadd.f32 %v789, %v851
    %853 = vmatprep.mubr.bf16.mxu0 %v347
    %854 = vmatmul.mubr.bf16.gmra.mxu0 %v346
    %v855 = vpop.f32.mrf.mxu0
    %v856 = vadd.f32 %v793, %v855
    %v857 = vpop.f32.mrf.mxu0
    %v858 = vadd.f32 %v795, %v857
    %v859 = vpop.f32.mrf.mxu0
    %v860 = vadd.f32 %v797, %v859
    %v861 = vpop.f32.mrf.mxu0
    %v862 = vadd.f32 %v799, %v861
    %863 = vmatprep.mubr.bf16.mxu0 %v351
    %864 = vmatmul.mubr.bf16.gmra.mxu0 %v350
    %v865 = vpop.f32.mrf.mxu0
    %v866 = vadd.f32 %v803, %v865
    %v867 = vpop.f32.mrf.mxu0
    %v868 = vadd.f32 %v805, %v867
    %v869 = vpop.f32.mrf.mxu0
    %v870 = vadd.f32 %v807, %v869
    %v871 = vpop.f32.mrf.mxu0
    %v872 = vadd.f32 %v809, %v871
    %873 = vdwg.mxu0
    %v874 = vmax.f32 %v846, 0.0
    %v875 = vmax.f32 %v848, 0.0
    %v876 = vmax.f32 %v850, 0.0
    %v877 = vmax.f32 %v852, 0.0
    %v878 = vmax.f32 %v856, 0.0
    %v879 = vmax.f32 %v858, 0.0
    %v880 = vmax.f32 %v860, 0.0
    %v881 = vmax.f32 %v862, 0.0
    %v882 = vmax.f32 %v866, 0.0
    %v883 = vmax.f32 %v868, 0.0
    %v884 = vmax.f32 %v870, 0.0
    %v885 = vmax.f32 %v872, 0.0
    %v886 = vpack.c.bf16 %v876, %v874
    %v887 = vpack.c.bf16 %v877, %v875
    %v888 = vpack.c.bf16 %v880, %v878
    %v889 = vpack.c.bf16 %v881, %v879
    %v890 = vpack.c.bf16 %v884, %v882
    %v891 = vpack.c.bf16 %v885, %v883
    %v892 = vld [vmem:[%s5] sm:$0xf]
    %v893 = vld [vmem:[%s5 + $0x4] sm:$0xf]
    %v894 = vld [vmem:[%s5 + $0x8] sm:$0xf]
    %v895 = vld [vmem:[%s5 + $0xc] sm:$0xf]
    %v896 = vld [vmem:[%s5 + $0x10] sm:$0xf]
    %v897 = vld [vmem:[%s5 + $0x14] sm:$0xf]
    %v898 = vld [vmem:[%s5 + $0x18] sm:$0xf]
    %v899 = vld [vmem:[%s5 + $0x1c] sm:$0xf]
    %v900 = vld [vmem:[%s5 + $0x20] sm:$0xf]
    %v901 = vld [vmem:[%s5 + $0x24] sm:$0xf]
    %v902 = vld [vmem:[%s5 + $0x28] sm:$0xf]
    %v903 = vld [vmem:[%s5 + $0x2c] sm:$0xf]
    %v904 = vld [vmem:[%s5 + $0x30] sm:$0xf]
    %v905 = vld [vmem:[%s5 + $0x34] sm:$0xf]
    %v906 = vld [vmem:[%s5 + $0x38] sm:$0xf]
    %v907 = vld [vmem:[%s5 + $0x3c] sm:$0xf]
    %v908 = vld [vmem:[%s5 + $0x40] sm:$0xf]
    %v909 = vld [vmem:[%s5 + $0x44] sm:$0xf]
    %v910 = vld [vmem:[%s5 + $0x48] sm:$0xf]
    %v911 = vld [vmem:[%s5 + $0x4c] sm:$0xf]
    %v912 = vld [vmem:[%s5 + $0x50] sm:$0xf]
    %v913 = vld [vmem:[%s5 + $0x54] sm:$0xf]
    %v914 = vld [vmem:[%s5 + $0x58] sm:$0xf]
    %v915 = vld [vmem:[%s5 + $0x5c] sm:$0xf]
    %v916 = vld [vmem:[%s5 + $0x60] sm:$0xf]
    %v917 = vld [vmem:[%s5 + $0x64] sm:$0xf]
    %v918 = vld [vmem:[%s5 + $0x68] sm:$0xf]
    %v919 = vld [vmem:[%s5 + $0x6c] sm:$0xf]
    %v920 = vld [vmem:[%s5 + $0x70] sm:$0xf]
    %v921 = vld [vmem:[%s5 + $0x74] sm:$0xf]
    %v922 = vld [vmem:[%s5 + $0x78] sm:$0xf]
    %v923 = vld [vmem:[%s5 + $0x7c] sm:$0xf]
    %v924 = vld [vmem:[%s6] sm:$0x1]
    %v926 = vlaneseq
    %v927 = vshrl.u32 %v926, 7
    %v928 = vsub.s32 0, %v927
    %v929 = vrot.slane %v924, %v928
    %v963 = vunpack.c.l.b16 %v892
    %v964 = vunpack.c.l.b16 %v893
    %v965 = vunpack.c.l.b16 %v894
    %v966 = vunpack.c.l.b16 %v895
    %v967 = vunpack.c.l.b16 %v896
    %v968 = vunpack.c.l.b16 %v897
    %v969 = vunpack.c.l.b16 %v898
    %v970 = vunpack.c.l.b16 %v899
    %v971 = vunpack.c.l.b16 %v900
    %v972 = vunpack.c.l.b16 %v901
    %v973 = vunpack.c.l.b16 %v902
    %v974 = vunpack.c.l.b16 %v903
    %v975 = vunpack.c.l.b16 %v904
    %v976 = vunpack.c.l.b16 %v905
    %v977 = vunpack.c.l.b16 %v906
    %v978 = vunpack.c.l.b16 %v907
    %v979 = vunpack.c.l.b16 %v908
    %v980 = vunpack.c.l.b16 %v909
    %v981 = vunpack.c.l.b16 %v910
    %v982 = vunpack.c.l.b16 %v911
    %v983 = vunpack.c.l.b16 %v912
    %v984 = vunpack.c.l.b16 %v913
    %v985 = vunpack.c.l.b16 %v914
    %v986 = vunpack.c.l.b16 %v915
    %v987 = vunpack.c.l.b16 %v916
    %v988 = vunpack.c.l.b16 %v917
    %v989 = vunpack.c.l.b16 %v918
    %v990 = vunpack.c.l.b16 %v919
    %v991 = vunpack.c.l.b16 %v920
    %v992 = vunpack.c.l.b16 %v921
    %v993 = vunpack.c.l.b16 %v922
    %v994 = vunpack.c.l.b16 %v923
    %v995 = vpack.c.b16 %v964, %v963
    %v996 = vpack.c.b16 %v966, %v965
    %v997 = vpack.c.b16 %v968, %v967
    %v998 = vpack.c.b16 %v970, %v969
    %v999 = vpack.c.b16 %v972, %v971
    %v1000 = vpack.c.b16 %v974, %v973
    %v1001 = vpack.c.b16 %v976, %v975
    %v1002 = vpack.c.b16 %v978, %v977
    %v1003 = vpack.c.b16 %v980, %v979
    %v1004 = vpack.c.b16 %v982, %v981
    %v1005 = vpack.c.b16 %v984, %v983
    %v1006 = vpack.c.b16 %v986, %v985
    %v1007 = vpack.c.b16 %v988, %v987
    %v1008 = vpack.c.b16 %v990, %v989
    %v1009 = vpack.c.b16 %v992, %v991
    %v1010 = vpack.c.b16 %v994, %v993
    %1027 = vmatprep.subr.bf16.mxu0 0
    %1028 = vmatpush1.bf16.msra.mxu0 %v1002
    %1029 = vmatprep.subr.bf16.mxu0 0
    %1030 = vmatpush1.bf16.msra.mxu0 %v1001
    %1031 = vmatprep.subr.bf16.mxu0 0
    %1032 = vmatpush1.bf16.msra.mxu0 %v1000
    %1033 = vmatprep.subr.bf16.mxu0 0
    %1034 = vmatpush1.bf16.msra.mxu0 %v999
    %1035 = vmatprep.subr.bf16.mxu0 0
    %1036 = vmatpush1.bf16.msra.mxu0 %v998
    %1037 = vmatprep.subr.bf16.mxu0 0
    %1038 = vmatpush1.bf16.msra.mxu0 %v997
    %1039 = vmatprep.subr.bf16.mxu0 0
    %1040 = vmatpush1.bf16.msra.mxu0 %v996
    %1041 = vmatprep.subr.bf16.mxu0 0
    %1042 = vmatpush1.bf16.msra.mxu0 %v995
    %1043 = vmatprep.subr.bf16.mxu0 0
    %1044 = vmatpush2.bf16.msra.mxu0 %v1010
    %1045 = vmatprep.subr.bf16.mxu0 0
    %1046 = vmatpush2.bf16.msra.mxu0 %v1009
    %1047 = vmatprep.subr.bf16.mxu0 0
    %1048 = vmatpush2.bf16.msra.mxu0 %v1008
    %1049 = vmatprep.subr.bf16.mxu0 0
    %1050 = vmatpush2.bf16.msra.mxu0 %v1007
    %1051 = vmatprep.subr.bf16.mxu0 0
    %1052 = vmatpush2.bf16.msra.mxu0 %v1006
    %1053 = vmatprep.subr.bf16.mxu0 0
    %1054 = vmatpush2.bf16.msra.mxu0 %v1005
    %1055 = vmatprep.subr.bf16.mxu0 0
    %1056 = vmatpush2.bf16.msra.mxu0 %v1004
    %1057 = vmatprep.subr.bf16.mxu0 0
    %1058 = vmatpush2.bf16.msra.mxu0 %v1003
    %1059 = vmatprep.mubr.bf16.mxu0 %v887
    %1060 = vmatmul.mubr.bf16.gmra.mxu0 %v886
    %v1061 = vpop.f32.mrf.mxu0
    %v1062 = vadd.f32 %v929, %v1061
    %v1063 = vpop.f32.mrf.mxu0
    %v1064 = vpop.f32.mrf.mxu0
    %v1065 = vadd.f32 %v929, %v1064
    %v1066 = vpop.f32.mrf.mxu0
    %1067 = vmatprep.mubr.bf16.mxu0 %v889
    %1068 = vmatmul.mubr.bf16.gmra.mxu0 %v888
    %v1069 = vpop.f32.mrf.mxu0
    %v1070 = vadd.f32 %v929, %v1069
    %v1071 = vpop.f32.mrf.mxu0
    %v1072 = vpop.f32.mrf.mxu0
    %v1073 = vadd.f32 %v929, %v1072
    %v1074 = vpop.f32.mrf.mxu0
    %1075 = vmatprep.mubr.bf16.mxu0 %v891
    %1076 = vmatmul.mubr.bf16.gmra.mxu0 %v890
    %v1077 = vpop.f32.mrf.mxu0
    %v1078 = vadd.f32 %v929, %v1077
    %v1079 = vpop.f32.mrf.mxu0
    %v1080 = vpop.f32.mrf.mxu0
    %v1081 = vadd.f32 %v929, %v1080
    %v1082 = vpop.f32.mrf.mxu0
    %1083 = vdwg.mxu0
    %vm1084 = vcmask 261120
    %1085 = vst.msk [vmem:[%s7] sm:$0xff] %vm1084, %v1062
    %1086 = vst.msk [vmem:[%s7 + $0x8] sm:$0xff] %vm1084, %v1065
    %1087 = vst.msk [vmem:[%s7 + $0x10] sm:$0xff] %vm1084, %v1070
    %1088 = vst.msk [vmem:[%s7 + $0x18] sm:$0xff] %vm1084, %v1073
    %1089 = vst.msk [vmem:[%s7 + $0x20] sm:$0xff] %vm1084, %v1078
    %1090 = vst.msk [vmem:[%s7 + $0x28] sm:$0xff] %vm1084, %v1081
    // Predicated region
    $region34: #{tpu_custom_call.1} parent=1 // pred_check
      _
    $region35: #{tpu_custom_call.1} parent=1 // pred_check_branch
      %1092 = sbr.rel (0) target = $region37
    $region36: #{tpu_custom_call.1} parent=1 // pred_region
      _
    $region37: #{tpu_custom_call.1} parent=1 // pred_fallthru
      _
    // Predicated region
    $region38: #{tpu_custom_call.1} parent=1 // pred_check
      _
    $region39: #{tpu_custom_call.1} parent=1 // pred_check_branch
      %1094 = sbr.rel (0) target = $region41
    $region40: #{tpu_custom_call.1} parent=1 // pred_region
      _
    $region41: #{tpu_custom_call.1} parent=1 // pred_fallthru
      _
    %1095 = vsyncpa [#allocation3], 1

</llo_original>
